<compile_context>
chip_gen: v5e
topology: v5e:2x2
jax: 0.10.0
libtpu: 0.0.40
codegen_flags: <defaults>
</compile_context>

<pallas_src>
import jax
import jax.numpy as jnp
from jax.experimental import pallas as pl
from jax.experimental.pallas import tpu as pltpu

EMBED_DIMS = 32
NUM_CLASSES = 2


def _unimlp_kernel(scales_ref,    # SMEM (2,)      [layer2['nn'], layer4['nn']]
                   h_ref,         # VMEM (tile_n, D) node-embedding tile
                   w_ref,         # VMEM (4, D, D)  packed W1 / W3 / W5a / W5b
                   b_ref,         # VMEM (4, 1, D)  packed biases (f32)
                   wclsT_ref,     # VMEM (C, D)     classifier weight, transposed
                   bclsT_ref,     # VMEM (C, 1)     classifier bias, transposed
                   out_ref):      # VMEM (C, tile_n) lane-dense output tile
    """Full UNIMLP_E2E 'n'-route MLP chain for one tile of nodes."""
    cdt = h_ref.dtype                      # compute (streaming) dtype
    x = h_ref[...]

    def lin_relu(v, k):
        y = jnp.dot(v, w_ref[k], preferred_element_type=jnp.float32) + b_ref[k]
        return jnp.maximum(y, 0.0)         # bias add / ReLU stay in f32

    x = lin_relu(x, 0) * scales_ref[0]               # layer1['n'] + layer2['nn']
    x = lin_relu(x.astype(cdt), 1) * scales_ref[1]   # layer3['n'] + layer4['nn']
    x = lin_relu(x.astype(cdt), 2)                   # layer56 Linear+ReLU #1
    x = lin_relu(x.astype(cdt), 3)                   # layer56 Linear+ReLU #2

    # Final classifier computed transposed (C, tile_n): contraction over D via
    # dot_general so the store is lane-dense (tile_n on the 128-lane axis).
    out_t = jax.lax.dot_general(
        wclsT_ref[...], x.astype(cdt),
        dimension_numbers=(((1,), (1,)), ((), ())),
        preferred_element_type=jnp.float32)          # (C, tile_n)
    out_ref[...] = (out_t + bclsT_ref[...]).astype(out_ref.dtype)


def _auto_tile_n(n):
    """Large tile (amortize ~0.35us/grid-step), but keep >=2 grid steps for
    v7x's two TensorCores, and a multiple of 128 so the transposed output
    block is lane-dense."""
    if n <= 256:
        return 128
    t = min(2048, pl.cdiv(n, 2))
    return max(128, (t // 128) * 128)


def unimlp_e2e_forward(h, params, *, tile_n=None, compute_dtype=jnp.float32):
    """Pallas wrapper. h: (N, embed_dims) node embeddings. Returns (N, num_classes)."""
    N, D = h.shape
    C = params["wcls"].shape[1]

    if tile_n is None:
        tile_n = _auto_tile_n(N)
    n_steps = pl.cdiv(N, tile_n)
    N_pad = n_steps * tile_n

    # Pack parameters (one-time layout plumbing in the wrapper).
    w_packed = jnp.stack(
        [params["w1"], params["w3"], params["w5a"], params["w5b"]]
    ).astype(compute_dtype)                                        # (4, D, D)
    b_packed = jnp.stack(
        [params["b1"], params["b3"], params["b5a"], params["b5b"]]
    ).astype(jnp.float32)                                          # (4, 1, D)
    wclsT = params["wcls"].T.astype(compute_dtype)                 # (C, D)
    bclsT = params["bcls"].T.astype(jnp.float32)                   # (C, 1)
    scales = jnp.concatenate(
        [params["s2"].reshape(-1), params["s4"].reshape(-1)]
    ).astype(jnp.float32)                                          # (2,)

    h_c = h.astype(compute_dtype)
    if N_pad != N:
        h_c = jnp.pad(h_c, ((0, N_pad - N), (0, 0)))

    in_specs = [
        pl.BlockSpec((tile_n, D), lambda i, s: (i, 0)),        # h tile
        pl.BlockSpec((4, D, D), lambda i, s: (0, 0, 0)),       # packed weights
        pl.BlockSpec((4, 1, D), lambda i, s: (0, 0, 0)),       # packed biases
        pl.BlockSpec((C, D), lambda i, s: (0, 0)),             # Wcls^T
        pl.BlockSpec((C, 1), lambda i, s: (0, 0)),             # bcls^T
    ]
    out_specs = pl.BlockSpec((C, tile_n), lambda i, s: (0, i))  # lane-dense

    out_t = pl.pallas_call(
        _unimlp_kernel,
        out_shape=jax.ShapeDtypeStruct((C, N_pad), jnp.float32),
        grid_spec=pltpu.PrefetchScalarGridSpec(
            num_scalar_prefetch=1,          # scales -> SMEM
            grid=(n_steps,),
            in_specs=in_specs,
            out_specs=out_specs,
        ),
        compiler_params=pltpu.CompilerParams(
            dimension_semantics=("parallel",)),
    )(scales, h_c, w_packed, b_packed, wclsT, bclsT)

    return out_t.T[:N]                                           # (N, C) f32


def init_params(key, embed_dims=EMBED_DIMS, num_classes=NUM_CLASSES):
    ks = jax.random.split(key, 10)

    def lin(kw, kb, din, dout):
        bound = 1.0 / jnp.sqrt(jnp.float32(din))
        w = jax.random.uniform(kw, (din, dout), jnp.float32, -bound, bound)
        b = jax.random.uniform(kb, (1, dout), jnp.float32, -bound, bound)
        return w, b

    w1, b1 = lin(ks[0], ks[1], embed_dims, embed_dims)        # layer1['n']
    w3, b3 = lin(ks[2], ks[3], embed_dims, embed_dims)        # layer3['n']
    w5a, b5a = lin(ks[4], ks[5], embed_dims, embed_dims)      # layer56[1]
    w5b, b5b = lin(ks[6], ks[7], embed_dims, embed_dims)      # layer56[3]
    wcls, bcls = lin(ks[8], ks[9], embed_dims, num_classes)   # layer56[5]
    return {
        "w1": w1, "b1": b1,
        "w3": w3, "b3": b3,
        "w5a": w5a, "b5a": b5a,
        "w5b": w5b, "b5b": b5b,
        "wcls": wcls, "bcls": bcls,
        # same-route cross-stitch params init to ones(1) in the module
        "s2": jnp.ones((1, 1), jnp.float32),   # layer2['nn']
        "s4": jnp.ones((1, 1), jnp.float32),   # layer4['nn']
    }


def unimlp_e2e_ref(h, p):
    """Pure-JAX reference of the same forward (for validation)."""
    x = jnp.maximum(h @ p["w1"] + p["b1"], 0.0) * p["s2"][0, 0]
    x = jnp.maximum(x @ p["w3"] + p["b3"], 0.0) * p["s4"][0, 0]
    x = jnp.maximum(x @ p["w5a"] + p["b5a"], 0.0)
    x = jnp.maximum(x @ p["w5b"] + p["b5b"], 0.0)
    return x @ p["wcls"] + p["bcls"]


if __name__ == "__main__":
    key = jax.random.PRNGKey(0)
    k_h, k_p = jax.random.split(key)

    # Nodes already embedded by pretrain_model.embed; N intentionally not
    # tile-aligned to exercise the padded-tail path.
    N = 1000
    h = jax.random.normal(k_h, (N, EMBED_DIMS), jnp.float32)
    params = init_params(k_p)

    ref = unimlp_e2e_ref(h, params)

    # f32 path (exact module semantics).
    out = jax.block_until_ready(unimlp_e2e_forward(h, params))
    assert out.shape == (N, NUM_CLASSES)
    assert jnp.allclose(out, ref, atol=2e-4, rtol=2e-4), "f32 mismatch vs reference"

    # bf16 streaming path (f32 MXU accumulation) — halves dominant HBM read.
    out_bf16 = jax.block_until_ready(
        unimlp_e2e_forward(h, params, compute_dtype=jnp.bfloat16))
    assert out_bf16.shape == (N, NUM_CLASSES)
    assert jnp.allclose(out_bf16, ref, atol=1e-1, rtol=1e-1), "bf16 drift too large"

    inner_state = {"n": out}  # module returns a dict keyed by output_route
    print("KERNEL_OK")
</pallas_src>

<mosaic_0001>
module attributes {stable_mosaic.version = 11 : i64} {
  func.func @_unimlp_kernel(%arg0: i32, %arg1: memref<2xf32, #tpu.memory_space<smem>>, %arg2: memref<384x32xf32, #tpu.memory_space<vmem>>, %arg3: memref<4x32x32xf32, #tpu.memory_space<vmem>>, %arg4: memref<4x1x32xf32, #tpu.memory_space<vmem>>, %arg5: memref<2x32xf32, #tpu.memory_space<vmem>>, %arg6: memref<2x1xf32, #tpu.memory_space<vmem>>, %arg7: memref<2x384xf32, #tpu.memory_space<vmem>>) attributes {dimension_semantics = [#tpu.dimension_semantics<parallel>], iteration_bounds = array<i64: 3>, scalar_prefetch = 1 : i64, scratch_operands = 0 : i64, tpu.core_type = #tpu.core_type<tc>, window_params = [{transform_indices = @transform_0, window_bounds = array<i64: 384, 32>}, {pipeline_mode = #tpu.pipeline_mode<synchronous>, transform_indices = @transform_1, window_bounds = array<i64: 4, 32, 32>}, {pipeline_mode = #tpu.pipeline_mode<synchronous>, transform_indices = @transform_2, window_bounds = array<i64: 4, 1, 32>}, {pipeline_mode = #tpu.pipeline_mode<synchronous>, transform_indices = @transform_3, window_bounds = array<i64: 2, 32>}, {pipeline_mode = #tpu.pipeline_mode<synchronous>, transform_indices = @transform_4, window_bounds = array<i64: 2, 1>}, {transform_indices = @transform_5, window_bounds = array<i64: 2, 384>}]} {
    %c0 = arith.constant 0 : index
    %c0_0 = arith.constant 0 : index
    %0 = vector.load %arg2[%c0, %c0_0] : memref<384x32xf32, #tpu.memory_space<vmem>>, vector<384x32xf32>
    %c0_1 = arith.constant 0 : index
    %c0_2 = arith.constant 0 : index
    %c0_3 = arith.constant 0 : index
    %1 = vector.load %arg3[%c0_1, %c0_2, %c0_3] : memref<4x32x32xf32, #tpu.memory_space<vmem>>, vector<1x32x32xf32>
    %2 = vector.shape_cast %1 : vector<1x32x32xf32> to vector<32x32xf32>
    %cst = arith.constant dense<0.000000e+00> : vector<384x32xf32>
    %3 = tpu.matmul %0, %2, %cst {dimension_numbers = #tpu.dot_dimension_numbers<[1], [0], [0], [1], [0, 0, 1, 1], [], []>} : vector<384x32xf32>, vector<32x32xf32>, vector<384x32xf32> -> vector<384x32xf32>
    %c0_4 = arith.constant 0 : index
    %c0_5 = arith.constant 0 : index
    %c0_6 = arith.constant 0 : index
    %4 = vector.load %arg4[%c0_4, %c0_5, %c0_6] : memref<4x1x32xf32, #tpu.memory_space<vmem>>, vector<1x1x32xf32>
    %5 = vector.shape_cast %4 : vector<1x1x32xf32> to vector<1x32xf32>
    %6 = vector.broadcast %5 : vector<1x32xf32> to vector<384x32xf32>
    %7 = arith.addf %3, %6 : vector<384x32xf32>
    %cst_7 = arith.constant 0.000000e+00 : f32
    %8 = vector.broadcast %cst_7 : f32 to vector<384x32xf32>
    %9 = arith.maximumf %7, %8 : vector<384x32xf32>
    %c0_8 = arith.constant 0 : index
    %10 = memref.load %arg1[%c0_8] : memref<2xf32, #tpu.memory_space<smem>>
    %11 = vector.broadcast %10 : f32 to vector<384x32xf32>
    %12 = arith.mulf %9, %11 : vector<384x32xf32>
    %c1 = arith.constant 1 : index
    %c0_9 = arith.constant 0 : index
    %c0_10 = arith.constant 0 : index
    %13 = vector.load %arg3[%c1, %c0_9, %c0_10] : memref<4x32x32xf32, #tpu.memory_space<vmem>>, vector<1x32x32xf32>
    %14 = vector.shape_cast %13 : vector<1x32x32xf32> to vector<32x32xf32>
    %cst_11 = arith.constant dense<0.000000e+00> : vector<384x32xf32>
    %15 = tpu.matmul %12, %14, %cst_11 {dimension_numbers = #tpu.dot_dimension_numbers<[1], [0], [0], [1], [0, 0, 1, 1], [], []>} : vector<384x32xf32>, vector<32x32xf32>, vector<384x32xf32> -> vector<384x32xf32>
    %c1_12 = arith.constant 1 : index
    %c0_13 = arith.constant 0 : index
    %c0_14 = arith.constant 0 : index
    %16 = vector.load %arg4[%c1_12, %c0_13, %c0_14] : memref<4x1x32xf32, #tpu.memory_space<vmem>>, vector<1x1x32xf32>
    %17 = vector.shape_cast %16 : vector<1x1x32xf32> to vector<1x32xf32>
    %18 = vector.broadcast %17 : vector<1x32xf32> to vector<384x32xf32>
    %19 = arith.addf %15, %18 : vector<384x32xf32>
    %cst_15 = arith.constant 0.000000e+00 : f32
    %20 = vector.broadcast %cst_15 : f32 to vector<384x32xf32>
    %21 = arith.maximumf %19, %20 : vector<384x32xf32>
    %c1_16 = arith.constant 1 : index
    %22 = memref.load %arg1[%c1_16] : memref<2xf32, #tpu.memory_space<smem>>
    %23 = vector.broadcast %22 : f32 to vector<384x32xf32>
    %24 = arith.mulf %21, %23 : vector<384x32xf32>
    %c2 = arith.constant 2 : index
    %c0_17 = arith.constant 0 : index
    %c0_18 = arith.constant 0 : index
    %25 = vector.load %arg3[%c2, %c0_17, %c0_18] : memref<4x32x32xf32, #tpu.memory_space<vmem>>, vector<1x32x32xf32>
    %26 = vector.shape_cast %25 : vector<1x32x32xf32> to vector<32x32xf32>
    %cst_19 = arith.constant dense<0.000000e+00> : vector<384x32xf32>
    %27 = tpu.matmul %24, %26, %cst_19 {dimension_numbers = #tpu.dot_dimension_numbers<[1], [0], [0], [1], [0, 0, 1, 1], [], []>} : vector<384x32xf32>, vector<32x32xf32>, vector<384x32xf32> -> vector<384x32xf32>
    %c2_20 = arith.constant 2 : index
    %c0_21 = arith.constant 0 : index
    %c0_22 = arith.constant 0 : index
    %28 = vector.load %arg4[%c2_20, %c0_21, %c0_22] : memref<4x1x32xf32, #tpu.memory_space<vmem>>, vector<1x1x32xf32>
    %29 = vector.shape_cast %28 : vector<1x1x32xf32> to vector<1x32xf32>
    %30 = vector.broadcast %29 : vector<1x32xf32> to vector<384x32xf32>
    %31 = arith.addf %27, %30 : vector<384x32xf32>
    %cst_23 = arith.constant 0.000000e+00 : f32
    %32 = vector.broadcast %cst_23 : f32 to vector<384x32xf32>
    %33 = arith.maximumf %31, %32 : vector<384x32xf32>
    %c3 = arith.constant 3 : index
    %c0_24 = arith.constant 0 : index
    %c0_25 = arith.constant 0 : index
    %34 = vector.load %arg3[%c3, %c0_24, %c0_25] : memref<4x32x32xf32, #tpu.memory_space<vmem>>, vector<1x32x32xf32>
    %35 = vector.shape_cast %34 : vector<1x32x32xf32> to vector<32x32xf32>
    %cst_26 = arith.constant dense<0.000000e+00> : vector<384x32xf32>
    %36 = tpu.matmul %33, %35, %cst_26 {dimension_numbers = #tpu.dot_dimension_numbers<[1], [0], [0], [1], [0, 0, 1, 1], [], []>} : vector<384x32xf32>, vector<32x32xf32>, vector<384x32xf32> -> vector<384x32xf32>
    %c3_27 = arith.constant 3 : index
    %c0_28 = arith.constant 0 : index
    %c0_29 = arith.constant 0 : index
    %37 = vector.load %arg4[%c3_27, %c0_28, %c0_29] : memref<4x1x32xf32, #tpu.memory_space<vmem>>, vector<1x1x32xf32>
    %38 = vector.shape_cast %37 : vector<1x1x32xf32> to vector<1x32xf32>
    %39 = vector.broadcast %38 : vector<1x32xf32> to vector<384x32xf32>
    %40 = arith.addf %36, %39 : vector<384x32xf32>
    %cst_30 = arith.constant 0.000000e+00 : f32
    %41 = vector.broadcast %cst_30 : f32 to vector<384x32xf32>
    %42 = arith.maximumf %40, %41 : vector<384x32xf32>
    %c0_31 = arith.constant 0 : index
    %c0_32 = arith.constant 0 : index
    %43 = vector.load %arg5[%c0_31, %c0_32] : memref<2x32xf32, #tpu.memory_space<vmem>>, vector<2x32xf32>
    %cst_33 = arith.constant dense<0.000000e+00> : vector<2x384xf32>
    %44 = tpu.matmul %43, %42, %cst_33 {dimension_numbers = #tpu.dot_dimension_numbers<[1], [1], [0], [0], [0, 0, 1, 0], [], []>} : vector<2x32xf32>, vector<384x32xf32>, vector<2x384xf32> -> vector<2x384xf32>
    %c0_34 = arith.constant 0 : index
    %c0_35 = arith.constant 0 : index
    %45 = vector.load %arg6[%c0_34, %c0_35] : memref<2x1xf32, #tpu.memory_space<vmem>>, vector<2x1xf32>
    %46 = vector.broadcast %45 : vector<2x1xf32> to vector<2x384xf32>
    %47 = arith.addf %44, %46 : vector<2x384xf32>
    %c0_36 = arith.constant 0 : index
    %c0_37 = arith.constant 0 : index
    %48 = vector.load %arg7[%c0_36, %c0_37] : memref<2x384xf32, #tpu.memory_space<vmem>>, vector<2x384xf32>
    tpu.vector_store %arg7[%c0_36, %c0_37], %47 {strides = array<i32>} : memref<2x384xf32, #tpu.memory_space<vmem>>, vector<2x384xf32>,
    return
  }
  func.func @transform_0(%arg0: i32, %arg1: memref<2xf32, #tpu.memory_space<smem>>) -> (i32, i32) {
    %c0_i32 = arith.constant 0 : i32
    %c0_i32_0 = arith.constant 0 : i32
    return %arg0, %c0_i32 : i32, i32
  }
  func.func @transform_1(%arg0: i32, %arg1: memref<2xf32, #tpu.memory_space<smem>>) -> (i32, i32, i32) {
    %c0_i32 = arith.constant 0 : i32
    %c0_i32_0 = arith.constant 0 : i32
    %c0_i32_1 = arith.constant 0 : i32
    %c0_i32_2 = arith.constant 0 : i32
    return %c0_i32, %c0_i32_0, %c0_i32_1 : i32, i32, i32
  }
  func.func @transform_2(%arg0: i32, %arg1: memref<2xf32, #tpu.memory_space<smem>>) -> (i32, i32, i32) {
    %c0_i32 = arith.constant 0 : i32
    %c0_i32_0 = arith.constant 0 : i32
    %c0_i32_1 = arith.constant 0 : i32
    %c0_i32_2 = arith.constant 0 : i32
    return %c0_i32, %c0_i32_0, %c0_i32_1 : i32, i32, i32
  }
  func.func @transform_3(%arg0: i32, %arg1: memref<2xf32, #tpu.memory_space<smem>>) -> (i32, i32) {
    %c0_i32 = arith.constant 0 : i32
    %c0_i32_0 = arith.constant 0 : i32
    %c0_i32_1 = arith.constant 0 : i32
    return %c0_i32, %c0_i32_0 : i32, i32
  }
  func.func @transform_4(%arg0: i32, %arg1: memref<2xf32, #tpu.memory_space<smem>>) -> (i32, i32) {
    %c0_i32 = arith.constant 0 : i32
    %c0_i32_0 = arith.constant 0 : i32
    %c0_i32_1 = arith.constant 0 : i32
    return %c0_i32, %c0_i32_0 : i32, i32
  }
  func.func @transform_5(%arg0: i32, %arg1: memref<2xf32, #tpu.memory_space<smem>>) -> (i32, i32) {
    %c0_i32 = arith.constant 0 : i32
    %c0_i32_0 = arith.constant 0 : i32
    return %c0_i32, %arg0 : i32, i32
  }
}

</mosaic_0001>

<llo_original>
// kernel: tpu_custom_call.1
$region0: #{tpu_custom_call.1}
  #allocation0 [shape = 'u32[]', space=smem, size = 0x4, offset = 0x4, fixed_abs, tag = 'smem constant byte address 0x4 - core index']
  #allocation1 [shape = 'u32[72,128]{1,0:T(1,128)}', space=vmem, size = 0x9000, scoped, tag = 'internal scratch']
  #allocation2 [shape = 's32[1]{0}', space=sflag, size = 0x4, scoped, tag = 'scoped memory for tpu_custom_call.1']
  #allocation3 [shape = 'u8[512]{0}', space=smem, size = 0x200, scoped, tag = 'prefetched SMEM operand 0']
  %s0 = inlined_call_operand.vmem [shape: f32[2], index: 0, kind: input, shape index: {}]
  %s1 = inlined_call_operand.vmem [shape: f32[1152,32], index: 1, kind: input, shape index: {}]
  %s2 = inlined_call_operand.vmem [shape: f32[4,32,32], index: 2, kind: input, shape index: {}]
  %s3 = inlined_call_operand.vmem [shape: f32[4,1,32], index: 3, kind: input, shape index: {}]
  %s4 = inlined_call_operand.vmem [shape: f32[2,32], index: 4, kind: input, shape index: {}]
  %s5 = inlined_call_operand.vmem [shape: f32[2,1], index: 5, kind: input, shape index: {}]
  %s6 = inlined_call_operand.hbm [shape: f32[2,1152], index: 6, kind: output, shape index: {}]
  %s7 = sld [smem:[#allocation0]]
  $region53: #{tpu_custom_call.1} parent=0
    _
  %s9 = ssub.s32 1, %s7
  %s10 = scalar_select 0, %s9, %s7
  %s12 = sshll.u32 %s0, 4
  %s13 = int_to_ptr.vmem [resolvable:$true] %s12
  %15 = dma.vmem_to_smem %s13, 16, [#allocation3], [#allocation2]
  %17 = dma.done [#allocation2], 16
  %18 = sfence
  $region1: #{tpu_custom_call.1} parent=0
    #allocation4 [shape = 'u8[6144]{0}', space=vmem, size = 0x1800, scoped, tag = 'output window, operand 0']
    #allocation5 [shape = 's32[2]{0}', space=sflag, size = 0x8, scoped, tag = 'scoped memory for tpu_custom_call.1']
    %19 = vsyncpa [#allocation5], 0
    %s20 = scalar_lea.sflag [#allocation5], 1
    %21 = vsyncpa %s20, 0
    loop: start=0, step=1, limit=5
    $region2: #{tpu_custom_call.1} parent=1 // loop_pre_header
      _
    $region3: #{tpu_custom_call.1} parent=1 // loop_header
      %s23 = sphi 0, %s27
      %p24 = scmp.ge.s32.totalorder %s23, 5
      %s33 = sphi 0, %s35
      %s36 = sphi 0, %s33
      %s37 = sphi 0, %s36
      %s53 = sphi 0, %s37
      %s57 = sphi 0, %s57
      %s59 = sphi 0, %s57
      %s60 = sphi 0, %s59
      %s74 = sphi 0, %s60
      %s78 = sphi 0, %s78
      %s80 = sphi 0, %s78
      %s81 = sphi 0, %s80
      %s95 = sphi 0, %s81
      %s99 = sphi 0, %s99
      %s101 = sphi 0, %s99
      %s102 = sphi 0, %s101
      %s116 = sphi 0, %s102
      %s120 = sphi 0, %s120
      %s122 = sphi 0, %s120
      %s123 = sphi 0, %s122
      %s137 = sphi 0, %s123
      %s143 = sphi 0, %s145
      %s146 = sphi 0, %s143
      %s147 = sphi 0, %s146
      %s163 = sphi 0, %s147
    $region4: #{tpu_custom_call.1} parent=1 // loop_header_branch
      %26 = sbr.rel (%p24) target = $region8
    $region5: #{tpu_custom_call.1} parent=1 // loop_body
      %s28 = ssub.s32 %s23, 1
      %s29 = ssub.s32 %s23, 2
      %s30 = sadd.s32 %s23, 1
      %s31 = ssub.s32 %s23, %s30
      %p32 = scmp.eq.s32.totalorder %s31, 0
      %s34 = sadd.s32 %s33, 1
      %s35 = scalar_select %p32, %s33, %s34
      %p38 = pneg %p32
      %p39 = scmp.eq.s32.totalorder %s23, 2
      %p40 = por %p38, %p39
      %p41 = scmp.ne.s32.totalorder %s33, %s36
      %p42 = scmp.eq.s32.totalorder %s23, 0
      %p43 = por %p41, %p42
      %p44 = scmp.ne.s32.totalorder %s33, %s36
      %p45 = scmp.eq.s32.totalorder %s28, 2
      %p46 = por %p44, %p45
      %p47 = scmp.ne.s32.totalorder %s36, %s37
      %p48 = scmp.eq.s32.totalorder %s28, 0
      %p49 = por %p47, %p48
      %p50 = scmp.ne.s32.totalorder %s36, %s37
      %p51 = scmp.eq.s32.totalorder %s29, 2
      %p52 = por %p50, %p51
      %p54 = scmp.ne.s32.totalorder %s37, %s53
      %p55 = scmp.eq.s32.totalorder %s29, 0
      %p56 = por %p54, %p55
      %s58 = sadd.s32 %s57, 1
      %p61 = scmp.eq.s32.totalorder %s23, 2
      %p62 = scmp.ne.s32.totalorder %s57, %s59
      %p63 = scmp.eq.s32.totalorder %s23, 0
      %p64 = por %p62, %p63
      %p65 = scmp.ne.s32.totalorder %s57, %s59
      %p66 = scmp.eq.s32.totalorder %s28, 2
      %p67 = por %p65, %p66
      %p68 = scmp.ne.s32.totalorder %s59, %s60
      %p69 = scmp.eq.s32.totalorder %s28, 0
      %p70 = por %p68, %p69
      %p71 = scmp.ne.s32.totalorder %s59, %s60
      %p72 = scmp.eq.s32.totalorder %s29, 2
      %p73 = por %p71, %p72
      %p75 = scmp.ne.s32.totalorder %s60, %s74
      %p76 = scmp.eq.s32.totalorder %s29, 0
      %p77 = por %p75, %p76
      %s79 = sadd.s32 %s78, 1
      %p82 = scmp.eq.s32.totalorder %s23, 2
      %p83 = scmp.ne.s32.totalorder %s78, %s80
      %p84 = scmp.eq.s32.totalorder %s23, 0
      %p85 = por %p83, %p84
      %p86 = scmp.ne.s32.totalorder %s78, %s80
      %p87 = scmp.eq.s32.totalorder %s28, 2
      %p88 = por %p86, %p87
      %p89 = scmp.ne.s32.totalorder %s80, %s81
      %p90 = scmp.eq.s32.totalorder %s28, 0
      %p91 = por %p89, %p90
      %p92 = scmp.ne.s32.totalorder %s80, %s81
      %p93 = scmp.eq.s32.totalorder %s29, 2
      %p94 = por %p92, %p93
      %p96 = scmp.ne.s32.totalorder %s81, %s95
      %p97 = scmp.eq.s32.totalorder %s29, 0
      %p98 = por %p96, %p97
      %s100 = sadd.s32 %s99, 1
      %p103 = scmp.eq.s32.totalorder %s23, 2
      %p104 = scmp.ne.s32.totalorder %s99, %s101
      %p105 = scmp.eq.s32.totalorder %s23, 0
      %p106 = por %p104, %p105
      %p107 = scmp.ne.s32.totalorder %s99, %s101
      %p108 = scmp.eq.s32.totalorder %s28, 2
      %p109 = por %p107, %p108
      %p110 = scmp.ne.s32.totalorder %s101, %s102
      %p111 = scmp.eq.s32.totalorder %s28, 0
      %p112 = por %p110, %p111
      %p113 = scmp.ne.s32.totalorder %s101, %s102
      %p114 = scmp.eq.s32.totalorder %s29, 2
      %p115 = por %p113, %p114
      %p117 = scmp.ne.s32.totalorder %s102, %s116
      %p118 = scmp.eq.s32.totalorder %s29, 0
      %p119 = por %p117, %p118
      %s121 = sadd.s32 %s120, 1
      %p124 = scmp.eq.s32.totalorder %s23, 2
      %p125 = scmp.ne.s32.totalorder %s120, %s122
      %p126 = scmp.eq.s32.totalorder %s23, 0
      %p127 = por %p125, %p126
      %p128 = scmp.ne.s32.totalorder %s120, %s122
      %p129 = scmp.eq.s32.totalorder %s28, 2
      %p130 = por %p128, %p129
      %p131 = scmp.ne.s32.totalorder %s122, %s123
      %p132 = scmp.eq.s32.totalorder %s28, 0
      %p133 = por %p131, %p132
      %p134 = scmp.ne.s32.totalorder %s122, %s123
      %p135 = scmp.eq.s32.totalorder %s29, 2
      %p136 = por %p134, %p135
      %p138 = scmp.ne.s32.totalorder %s123, %s137
      %p139 = scmp.eq.s32.totalorder %s29, 0
      %p140 = por %p138, %p139
      %s141 = ssub.s32 %s23, %s30
      %p142 = scmp.eq.s32.totalorder %s141, 0
      %s144 = sadd.s32 %s143, 1
      %s145 = scalar_select %p142, %s143, %s144
      %p148 = pneg %p142
      %p149 = scmp.eq.s32.totalorder %s23, 2
      %p150 = por %p148, %p149
      %p151 = scmp.ne.s32.totalorder %s143, %s146
      %p152 = scmp.eq.s32.totalorder %s23, 0
      %p153 = por %p151, %p152
      %p154 = scmp.ne.s32.totalorder %s143, %s146
      %p155 = scmp.eq.s32.totalorder %s28, 2
      %p156 = por %p154, %p155
      %p157 = scmp.ne.s32.totalorder %s146, %s147
      %p158 = scmp.eq.s32.totalorder %s28, 0
      %p159 = por %p157, %p158
      %p160 = scmp.ne.s32.totalorder %s146, %s147
      %p161 = scmp.eq.s32.totalorder %s29, 2
      %p162 = por %p160, %p161
      %p164 = scmp.ne.s32.totalorder %s147, %s163
      %p165 = scmp.eq.s32.totalorder %s29, 0
      %p166 = por %p164, %p165
      %p167 = scmp.le.s32.totalorder 1, %s23
      %p168 = scmp.lt.s32.totalorder %s23, 4
      %p169 = pnand %p167, %p168
      %p170 = pneg %p169
      // Predicated region
      $region9: #{tpu_custom_call.1} parent=5 // pred_check
        _
      $region10: #{tpu_custom_call.1} parent=5 // pred_check_branch
        %172 = sbr.rel (%p169) target = $region12
      $region11: #{tpu_custom_call.1} parent=5 // pred_region
        %s173 = ssub.s32 %s23, 1
        // Predicated region
        $region13: #{tpu_custom_call.1} parent=11 // pred_check
          %p174 = pneg %p70
        $region14: #{tpu_custom_call.1} parent=11 // pred_check_branch
          %176 = sbr.rel (%p174) target = $region16
        $region15: #{tpu_custom_call.1} parent=11 // pred_region
          _
        $region16: #{tpu_custom_call.1} parent=11 // pred_fallthru
          _
        // Predicated region
        $region17: #{tpu_custom_call.1} parent=11 // pred_check
          %p177 = pneg %p91
        $region18: #{tpu_custom_call.1} parent=11 // pred_check_branch
          %179 = sbr.rel (%p177) target = $region20
        $region19: #{tpu_custom_call.1} parent=11 // pred_region
          _
        $region20: #{tpu_custom_call.1} parent=11 // pred_fallthru
          _
        // Predicated region
        $region21: #{tpu_custom_call.1} parent=11 // pred_check
          %p180 = pneg %p112
        $region22: #{tpu_custom_call.1} parent=11 // pred_check_branch
          %182 = sbr.rel (%p180) target = $region24
        $region23: #{tpu_custom_call.1} parent=11 // pred_region
          _
        $region24: #{tpu_custom_call.1} parent=11 // pred_fallthru
          _
        // Predicated region
        $region25: #{tpu_custom_call.1} parent=11 // pred_check
          %p183 = pneg %p133
        $region26: #{tpu_custom_call.1} parent=11 // pred_check_branch
          %185 = sbr.rel (%p183) target = $region28
        $region27: #{tpu_custom_call.1} parent=11 // pred_region
          _
        $region28: #{tpu_custom_call.1} parent=11 // pred_fallthru
          _
      $region12: #{tpu_custom_call.1} parent=5 // pred_fallthru
        _
      %p186 = scmp.lt.s32.totalorder %s23, 3
      // Predicated region
      $region29: #{tpu_custom_call.1} parent=5 // pred_check
        %p187 = pneg %p186
      $region30: #{tpu_custom_call.1} parent=5 // pred_check_branch
        %189 = sbr.rel (%p187) target = $region32
      $region31: #{tpu_custom_call.1} parent=5 // pred_region
        // Predicated region
        $region33: #{tpu_custom_call.1} parent=31 // pred_check
          %p190 = pneg %p43
        $region34: #{tpu_custom_call.1} parent=31 // pred_check_branch
          %192 = sbr.rel (%p190) target = $region36
        $region35: #{tpu_custom_call.1} parent=31 // pred_region
          %s193 = smul.u32 48, %s23
          %p194 = scmp.lt.s32.totalorder %s193, 143
          %s195 = scalar_select %p194, %s193, 143
          %s196 = smul.addr %s195, 8
          %s197 = scalar_lea.vmem %s1, %s196
          %s198 = smul.u32 48, %s23
        $region36: #{tpu_custom_call.1} parent=31 // pred_fallthru
          _
      $region32: #{tpu_custom_call.1} parent=5 // pred_fallthru
        _
      %p199 = scmp.le.s32.totalorder 1, %s23
      %p200 = scmp.lt.s32.totalorder %s23, 4
      %p201 = pnand %p199, %p200
      %p202 = pneg %p201
      // Predicated region
      $region37: #{tpu_custom_call.1} parent=5 // pred_check
        _
      $region38: #{tpu_custom_call.1} parent=5 // pred_check_branch
        %204 = sbr.rel (%p201) target = $region40
      $region39: #{tpu_custom_call.1} parent=5 // pred_region
        %s205 = ssub.s32 %s23, 1
        %s206 = smul.u32 48, %s28
        %p207 = scmp.lt.s32.totalorder %s206, 143
        %s208 = scalar_select %p207, %s206, 143
        %s209 = smul.addr %s208, 8
        %s210 = scalar_lea.vmem %s1, %s209
        %p211 = pneg %p49
        %p212 = pneg %p46
        %p213 = pneg %p70
        %p214 = pneg %p67
        %p215 = pneg %p91
        %p216 = pneg %p88
        %p217 = pneg %p112
        %p218 = pneg %p109
        %p219 = pneg %p133
        %p220 = pneg %p130
        %p221 = pneg %p159
        %p222 = pneg %p156
        %s223 = sand.u32 %s146, 1
        %s224 = scalar_lea.sflag [#allocation5], %s223
        %s225 = sand.u32 %s146, 1
        %s226 = smul.addr %s225, 6
        %s227 = scalar_lea.vmem [#allocation4], %s226
        %s228 = smul.u32 48, %s28
        %p229 = scmp.lt.s32.totalorder %s228, 143
        %s230 = scalar_select %p229, %s228, 143
        %s231 = smul.addr %s230, 8
        %s232 = scalar_lea.vmem %s1, %s231
        %s233 = smul.u32 48, %s28
        %s234 = smul.u32 3, %s28
        %v235 = vld [vmem:[%s232] sm:$0xff]
        %v236 = vld [vmem:[%s232 + $0x8] sm:$0xff]
        %v237 = vld [vmem:[%s232 + $0x10] sm:$0xff]
        %v238 = vld [vmem:[%s232 + $0x18] sm:$0xff]
        %v239 = vld [vmem:[%s232 + $0x20] sm:$0xff]
        %v240 = vld [vmem:[%s232 + $0x28] sm:$0xff]
        %v241 = vld [vmem:[%s232 + $0x30] sm:$0xff]
        %v242 = vld [vmem:[%s232 + $0x38] sm:$0xff]
        %v243 = vld [vmem:[%s232 + $0x40] sm:$0xff]
        %v244 = vld [vmem:[%s232 + $0x48] sm:$0xff]
        %v245 = vld [vmem:[%s232 + $0x50] sm:$0xff]
        %v246 = vld [vmem:[%s232 + $0x58] sm:$0xff]
        %v247 = vld [vmem:[%s232 + $0x60] sm:$0xff]
        %v248 = vld [vmem:[%s232 + $0x68] sm:$0xff]
        %v249 = vld [vmem:[%s232 + $0x70] sm:$0xff]
        %v250 = vld [vmem:[%s232 + $0x78] sm:$0xff]
        %v251 = vld [vmem:[%s232 + $0x80] sm:$0xff]
        %v252 = vld [vmem:[%s232 + $0x88] sm:$0xff]
        %v253 = vld [vmem:[%s232 + $0x90] sm:$0xff]
        %v254 = vld [vmem:[%s232 + $0x98] sm:$0xff]
        %v255 = vld [vmem:[%s232 + $0xa0] sm:$0xff]
        %v256 = vld [vmem:[%s232 + $0xa8] sm:$0xff]
        %v257 = vld [vmem:[%s232 + $0xb0] sm:$0xff]
        %v258 = vld [vmem:[%s232 + $0xb8] sm:$0xff]
        %v259 = vld [vmem:[%s232 + $0xc0] sm:$0xff]
        %v260 = vld [vmem:[%s232 + $0xc8] sm:$0xff]
        %v261 = vld [vmem:[%s232 + $0xd0] sm:$0xff]
        %v262 = vld [vmem:[%s232 + $0xd8] sm:$0xff]
        %v263 = vld [vmem:[%s232 + $0xe0] sm:$0xff]
        %v264 = vld [vmem:[%s232 + $0xe8] sm:$0xff]
        %v265 = vld [vmem:[%s232 + $0xf0] sm:$0xff]
        %v266 = vld [vmem:[%s232 + $0xf8] sm:$0xff]
        %v267 = vld [vmem:[%s232 + $0x100] sm:$0xff]
        %v268 = vld [vmem:[%s232 + $0x108] sm:$0xff]
        %v269 = vld [vmem:[%s232 + $0x110] sm:$0xff]
        %v270 = vld [vmem:[%s232 + $0x118] sm:$0xff]
        %v271 = vld [vmem:[%s232 + $0x120] sm:$0xff]
        %v272 = vld [vmem:[%s232 + $0x128] sm:$0xff]
        %v273 = vld [vmem:[%s232 + $0x130] sm:$0xff]
        %v274 = vld [vmem:[%s232 + $0x138] sm:$0xff]
        %v275 = vld [vmem:[%s232 + $0x140] sm:$0xff]
        %v276 = vld [vmem:[%s232 + $0x148] sm:$0xff]
        %v277 = vld [vmem:[%s232 + $0x150] sm:$0xff]
        %v278 = vld [vmem:[%s232 + $0x158] sm:$0xff]
        %v279 = vld [vmem:[%s232 + $0x160] sm:$0xff]
        %v280 = vld [vmem:[%s232 + $0x168] sm:$0xff]
        %v281 = vld [vmem:[%s232 + $0x170] sm:$0xff]
        %v282 = vld [vmem:[%s232 + $0x178] sm:$0xff]
        %v283 = vld [vmem:[%s2] sm:$0xff]
        %v284 = vld [vmem:[%s2 + $0x8] sm:$0xff]
        %v285 = vld [vmem:[%s2 + $0x10] sm:$0xff]
        %v286 = vld [vmem:[%s2 + $0x18] sm:$0xff]
        %v287 = vld [vmem:[%s3] sm:$0x1]
        %v289 = vperm.slane %v287, 0
        %vm291 = vcmask 261120
        %v293 = vsel %vm291, %v235, 0
        %v296 = vsel %vm291, %v236, 0
        %v299 = vsel %vm291, %v237, 0
        %v302 = vsel %vm291, %v238, 0
        %v305 = vsel %vm291, %v239, 0
        %v308 = vsel %vm291, %v240, 0
        %v311 = vsel %vm291, %v241, 0
        %v314 = vsel %vm291, %v242, 0
        %v317 = vsel %vm291, %v243, 0
        %v320 = vsel %vm291, %v244, 0
        %v323 = vsel %vm291, %v245, 0
        %v326 = vsel %vm291, %v246, 0
        %v329 = vsel %vm291, %v247, 0
        %v332 = vsel %vm291, %v248, 0
        %v335 = vsel %vm291, %v249, 0
        %v338 = vsel %vm291, %v250, 0
        %v341 = vsel %vm291, %v251, 0
        %v344 = vsel %vm291, %v252, 0
        %v347 = vsel %vm291, %v253, 0
        %v350 = vsel %vm291, %v254, 0
        %v353 = vsel %vm291, %v255, 0
        %v356 = vsel %vm291, %v256, 0
        %v359 = vsel %vm291, %v257, 0
        %v362 = vsel %vm291, %v258, 0
        %v365 = vsel %vm291, %v259, 0
        %v368 = vsel %vm291, %v260, 0
        %v371 = vsel %vm291, %v261, 0
        %v374 = vsel %vm291, %v262, 0
        %v377 = vsel %vm291, %v263, 0
        %v380 = vsel %vm291, %v264, 0
        %v383 = vsel %vm291, %v265, 0
        %v386 = vsel %vm291, %v266, 0
        %v389 = vsel %vm291, %v267, 0
        %v392 = vsel %vm291, %v268, 0
        %v395 = vsel %vm291, %v269, 0
        %v398 = vsel %vm291, %v270, 0
        %v401 = vsel %vm291, %v271, 0
        %v404 = vsel %vm291, %v272, 0
        %v407 = vsel %vm291, %v273, 0
        %v410 = vsel %vm291, %v274, 0
        %v413 = vsel %vm291, %v275, 0
        %v416 = vsel %vm291, %v276, 0
        %v419 = vsel %vm291, %v277, 0
        %v422 = vsel %vm291, %v278, 0
        %v425 = vsel %vm291, %v279, 0
        %v428 = vsel %vm291, %v280, 0
        %v431 = vsel %vm291, %v281, 0
        %v434 = vsel %vm291, %v282, 0
        %436 = vmatpush.msra.mxu0 0.0
        %437 = vmatpush.msra.mxu0 0.0
        %438 = vmatpush.msra.mxu0 0.0
        %439 = vmatpush.msra.mxu0 0.0
        %440 = vmatpush.msra.mxu0 0.0
        %441 = vmatpush.msra.mxu0 0.0
        %442 = vmatpush.msra.mxu0 0.0
        %443 = vmatpush.msra.mxu0 0.0
        %444 = vmatpush.msra.mxu0 0.0
        %445 = vmatpush.msra.mxu0 0.0
        %446 = vmatpush.msra.mxu0 0.0
        %447 = vmatpush.msra.mxu0 0.0
        %448 = vmatpush.msra.mxu0 %v286
        %449 = vmatpush.msra.mxu0 %v285
        %450 = vmatpush.msra.mxu0 %v284
        %451 = vmatpush.msra.mxu0 %v283
        %452 = vmatmul.f32.gmra.mxu0 %v293
        %v453 = vpop.f32.mrf.mxu0
        %v454 = vadd.f32 %v289, %v453
        %455 = vmatmul.f32.gmra.mxu0 %v296
        %v456 = vpop.f32.mrf.mxu0
        %v457 = vadd.f32 %v289, %v456
        %458 = vmatmul.f32.gmra.mxu0 %v299
        %v459 = vpop.f32.mrf.mxu0
        %v460 = vadd.f32 %v289, %v459
        %461 = vmatmul.f32.gmra.mxu0 %v302
        %v462 = vpop.f32.mrf.mxu0
        %v463 = vadd.f32 %v289, %v462
        %464 = vmatmul.f32.gmra.mxu0 %v305
        %v465 = vpop.f32.mrf.mxu0
        %v466 = vadd.f32 %v289, %v465
        %467 = vmatmul.f32.gmra.mxu0 %v308
        %v468 = vpop.f32.mrf.mxu0
        %v469 = vadd.f32 %v289, %v468
        %470 = vmatmul.f32.gmra.mxu0 %v311
        %v471 = vpop.f32.mrf.mxu0
        %v472 = vadd.f32 %v289, %v471
        %473 = vmatmul.f32.gmra.mxu0 %v314
        %v474 = vpop.f32.mrf.mxu0
        %v475 = vadd.f32 %v289, %v474
        %476 = vmatmul.f32.gmra.mxu0 %v317
        %v477 = vpop.f32.mrf.mxu0
        %v478 = vadd.f32 %v289, %v477
        %479 = vmatmul.f32.gmra.mxu0 %v320
        %v480 = vpop.f32.mrf.mxu0
        %v481 = vadd.f32 %v289, %v480
        %482 = vmatmul.f32.gmra.mxu0 %v323
        %v483 = vpop.f32.mrf.mxu0
        %v484 = vadd.f32 %v289, %v483
        %485 = vmatmul.f32.gmra.mxu0 %v326
        %v486 = vpop.f32.mrf.mxu0
        %v487 = vadd.f32 %v289, %v486
        %488 = vmatmul.f32.gmra.mxu0 %v329
        %v489 = vpop.f32.mrf.mxu0
        %v490 = vadd.f32 %v289, %v489
        %491 = vmatmul.f32.gmra.mxu0 %v332
        %v492 = vpop.f32.mrf.mxu0
        %v493 = vadd.f32 %v289, %v492
        %494 = vmatmul.f32.gmra.mxu0 %v335
        %v495 = vpop.f32.mrf.mxu0
        %v496 = vadd.f32 %v289, %v495
        %497 = vmatmul.f32.gmra.mxu0 %v338
        %v498 = vpop.f32.mrf.mxu0
        %v499 = vadd.f32 %v289, %v498
        %500 = vmatmul.f32.gmra.mxu0 %v341
        %v501 = vpop.f32.mrf.mxu0
        %v502 = vadd.f32 %v289, %v501
        %503 = vmatmul.f32.gmra.mxu0 %v344
        %v504 = vpop.f32.mrf.mxu0
        %v505 = vadd.f32 %v289, %v504
        %506 = vmatmul.f32.gmra.mxu0 %v347
        %v507 = vpop.f32.mrf.mxu0
        %v508 = vadd.f32 %v289, %v507
        %509 = vmatmul.f32.gmra.mxu0 %v350
        %v510 = vpop.f32.mrf.mxu0
        %v511 = vadd.f32 %v289, %v510
        %512 = vmatmul.f32.gmra.mxu0 %v353
        %v513 = vpop.f32.mrf.mxu0
        %v514 = vadd.f32 %v289, %v513
        %515 = vmatmul.f32.gmra.mxu0 %v356
        %v516 = vpop.f32.mrf.mxu0
        %v517 = vadd.f32 %v289, %v516
        %518 = vmatmul.f32.gmra.mxu0 %v359
        %v519 = vpop.f32.mrf.mxu0
        %v520 = vadd.f32 %v289, %v519
        %521 = vmatmul.f32.gmra.mxu0 %v362
        %v522 = vpop.f32.mrf.mxu0
        %v523 = vadd.f32 %v289, %v522
        %524 = vmatmul.f32.gmra.mxu0 %v365
        %v525 = vpop.f32.mrf.mxu0
        %v526 = vadd.f32 %v289, %v525
        %527 = vmatmul.f32.gmra.mxu0 %v368
        %v528 = vpop.f32.mrf.mxu0
        %v529 = vadd.f32 %v289, %v528
        %530 = vmatmul.f32.gmra.mxu0 %v371
        %v531 = vpop.f32.mrf.mxu0
        %v532 = vadd.f32 %v289, %v531
        %533 = vmatmul.f32.gmra.mxu0 %v374
        %v534 = vpop.f32.mrf.mxu0
        %v535 = vadd.f32 %v289, %v534
        %536 = vmatmul.f32.gmra.mxu0 %v377
        %v537 = vpop.f32.mrf.mxu0
        %v538 = vadd.f32 %v289, %v537
        %539 = vmatmul.f32.gmra.mxu0 %v380
        %v540 = vpop.f32.mrf.mxu0
        %v541 = vadd.f32 %v289, %v540
        %542 = vmatmul.f32.gmra.mxu0 %v383
        %v543 = vpop.f32.mrf.mxu0
        %v544 = vadd.f32 %v289, %v543
        %545 = vmatmul.f32.gmra.mxu0 %v386
        %v546 = vpop.f32.mrf.mxu0
        %v547 = vadd.f32 %v289, %v546
        %548 = vmatmul.f32.gmra.mxu0 %v389
        %v549 = vpop.f32.mrf.mxu0
        %v550 = vadd.f32 %v289, %v549
        %551 = vmatmul.f32.gmra.mxu0 %v392
        %v552 = vpop.f32.mrf.mxu0
        %v553 = vadd.f32 %v289, %v552
        %554 = vmatmul.f32.gmra.mxu0 %v395
        %v555 = vpop.f32.mrf.mxu0
        %v556 = vadd.f32 %v289, %v555
        %557 = vmatmul.f32.gmra.mxu0 %v398
        %v558 = vpop.f32.mrf.mxu0
        %v559 = vadd.f32 %v289, %v558
        %560 = vmatmul.f32.gmra.mxu0 %v401
        %v561 = vpop.f32.mrf.mxu0
        %v562 = vadd.f32 %v289, %v561
        %563 = vmatmul.f32.gmra.mxu0 %v404
        %v564 = vpop.f32.mrf.mxu0
        %v565 = vadd.f32 %v289, %v564
        %566 = vmatmul.f32.gmra.mxu0 %v407
        %v567 = vpop.f32.mrf.mxu0
        %v568 = vadd.f32 %v289, %v567
        %569 = vmatmul.f32.gmra.mxu0 %v410
        %v570 = vpop.f32.mrf.mxu0
        %v571 = vadd.f32 %v289, %v570
        %572 = vmatmul.f32.gmra.mxu0 %v413
        %v573 = vpop.f32.mrf.mxu0
        %v574 = vadd.f32 %v289, %v573
        %575 = vmatmul.f32.gmra.mxu0 %v416
        %v576 = vpop.f32.mrf.mxu0
        %v577 = vadd.f32 %v289, %v576
        %578 = vmatmul.f32.gmra.mxu0 %v419
        %v579 = vpop.f32.mrf.mxu0
        %v580 = vadd.f32 %v289, %v579
        %581 = vmatmul.f32.gmra.mxu0 %v422
        %v582 = vpop.f32.mrf.mxu0
        %v583 = vadd.f32 %v289, %v582
        %584 = vmatmul.f32.gmra.mxu0 %v425
        %v585 = vpop.f32.mrf.mxu0
        %v586 = vadd.f32 %v289, %v585
        %587 = vmatmul.f32.gmra.mxu0 %v428
        %v588 = vpop.f32.mrf.mxu0
        %v589 = vadd.f32 %v289, %v588
        %590 = vmatmul.f32.gmra.mxu0 %v431
        %v591 = vpop.f32.mrf.mxu0
        %v592 = vadd.f32 %v289, %v591
        %593 = vmatmul.f32.gmra.mxu0 %v434
        %v594 = vpop.f32.mrf.mxu0
        %v595 = vadd.f32 %v289, %v594
        %596 = vdwg.mxu0
        %v597 = vmax.f32 %v454, 0.0
        %v598 = vmax.f32 %v457, 0.0
        %v599 = vmax.f32 %v460, 0.0
        %v600 = vmax.f32 %v463, 0.0
        %v601 = vmax.f32 %v466, 0.0
        %v602 = vmax.f32 %v469, 0.0
        %v603 = vmax.f32 %v472, 0.0
        %v604 = vmax.f32 %v475, 0.0
        %v605 = vmax.f32 %v478, 0.0
        %v606 = vmax.f32 %v481, 0.0
        %v607 = vmax.f32 %v484, 0.0
        %v608 = vmax.f32 %v487, 0.0
        %v609 = vmax.f32 %v490, 0.0
        %v610 = vmax.f32 %v493, 0.0
        %v611 = vmax.f32 %v496, 0.0
        %v612 = vmax.f32 %v499, 0.0
        %v613 = vmax.f32 %v502, 0.0
        %v614 = vmax.f32 %v505, 0.0
        %v615 = vmax.f32 %v508, 0.0
        %v616 = vmax.f32 %v511, 0.0
        %v617 = vmax.f32 %v514, 0.0
        %v618 = vmax.f32 %v517, 0.0
        %v619 = vmax.f32 %v520, 0.0
        %v620 = vmax.f32 %v523, 0.0
        %v621 = vmax.f32 %v526, 0.0
        %v622 = vmax.f32 %v529, 0.0
        %v623 = vmax.f32 %v532, 0.0
        %v624 = vmax.f32 %v535, 0.0
        %v625 = vmax.f32 %v538, 0.0
        %v626 = vmax.f32 %v541, 0.0
        %v627 = vmax.f32 %v544, 0.0
        %v628 = vmax.f32 %v547, 0.0
        %v629 = vmax.f32 %v550, 0.0
        %v630 = vmax.f32 %v553, 0.0
        %v631 = vmax.f32 %v556, 0.0
        %v632 = vmax.f32 %v559, 0.0
        %v633 = vmax.f32 %v562, 0.0
        %v634 = vmax.f32 %v565, 0.0
        %v635 = vmax.f32 %v568, 0.0
        %v636 = vmax.f32 %v571, 0.0
        %v637 = vmax.f32 %v574, 0.0
        %v638 = vmax.f32 %v577, 0.0
        %v639 = vmax.f32 %v580, 0.0
        %v640 = vmax.f32 %v583, 0.0
        %v641 = vmax.f32 %v586, 0.0
        %v642 = vmax.f32 %v589, 0.0
        %v643 = vmax.f32 %v592, 0.0
        %v644 = vmax.f32 %v595, 0.0
        %s645 = sld [smem:[#allocation3]]
        %v646 = vstv %s645
        %v647 = vmul.f32 %v597, %v646
        %v648 = vmul.f32 %v598, %v646
        %v649 = vmul.f32 %v599, %v646
        %v650 = vmul.f32 %v600, %v646
        %v651 = vmul.f32 %v601, %v646
        %v652 = vmul.f32 %v602, %v646
        %v653 = vmul.f32 %v603, %v646
        %v654 = vmul.f32 %v604, %v646
        %v655 = vmul.f32 %v605, %v646
        %v656 = vmul.f32 %v606, %v646
        %v657 = vmul.f32 %v607, %v646
        %v658 = vmul.f32 %v608, %v646
        %v659 = vmul.f32 %v609, %v646
        %v660 = vmul.f32 %v610, %v646
        %v661 = vmul.f32 %v611, %v646
        %v662 = vmul.f32 %v612, %v646
        %v663 = vmul.f32 %v613, %v646
        %v664 = vmul.f32 %v614, %v646
        %v665 = vmul.f32 %v615, %v646
        %v666 = vmul.f32 %v616, %v646
        %v667 = vmul.f32 %v617, %v646
        %v668 = vmul.f32 %v618, %v646
        %v669 = vmul.f32 %v619, %v646
        %v670 = vmul.f32 %v620, %v646
        %v671 = vmul.f32 %v621, %v646
        %v672 = vmul.f32 %v622, %v646
        %v673 = vmul.f32 %v623, %v646
        %v674 = vmul.f32 %v624, %v646
        %v675 = vmul.f32 %v625, %v646
        %v676 = vmul.f32 %v626, %v646
        %v677 = vmul.f32 %v627, %v646
        %v678 = vmul.f32 %v628, %v646
        %v679 = vmul.f32 %v629, %v646
        %v680 = vmul.f32 %v630, %v646
        %v681 = vmul.f32 %v631, %v646
        %v682 = vmul.f32 %v632, %v646
        %v683 = vmul.f32 %v633, %v646
        %v684 = vmul.f32 %v634, %v646
        %v685 = vmul.f32 %v635, %v646
        %v686 = vmul.f32 %v636, %v646
        %v687 = vmul.f32 %v637, %v646
        %v688 = vmul.f32 %v638, %v646
        %v689 = vmul.f32 %v639, %v646
        %v690 = vmul.f32 %v640, %v646
        %v691 = vmul.f32 %v641, %v646
        %v692 = vmul.f32 %v642, %v646
        %v693 = vmul.f32 %v643, %v646
        %v694 = vmul.f32 %v644, %v646
        %s695 = scalar_lea.vmem %s2, 32
        %v696 = vld [vmem:[%s695] sm:$0xff]
        %v697 = vld [vmem:[%s695 + $0x8] sm:$0xff]
        %v698 = vld [vmem:[%s695 + $0x10] sm:$0xff]
        %v699 = vld [vmem:[%s695 + $0x18] sm:$0xff]
        %s700 = scalar_lea.vmem %s3, 1
        %v701 = vld [vmem:[%s700] sm:$0x1]
        %v703 = vperm.slane %v701, 0
        %v706 = vsel %vm291, %v647, 0
        %v709 = vsel %vm291, %v648, 0
        %v712 = vsel %vm291, %v649, 0
        %v715 = vsel %vm291, %v650, 0
        %v718 = vsel %vm291, %v651, 0
        %v721 = vsel %vm291, %v652, 0
        %v724 = vsel %vm291, %v653, 0
        %v727 = vsel %vm291, %v654, 0
        %v730 = vsel %vm291, %v655, 0
        %v733 = vsel %vm291, %v656, 0
        %v736 = vsel %vm291, %v657, 0
        %v739 = vsel %vm291, %v658, 0
        %v742 = vsel %vm291, %v659, 0
        %v745 = vsel %vm291, %v660, 0
        %v748 = vsel %vm291, %v661, 0
        %v751 = vsel %vm291, %v662, 0
        %v754 = vsel %vm291, %v663, 0
        %v757 = vsel %vm291, %v664, 0
        %v760 = vsel %vm291, %v665, 0
        %v763 = vsel %vm291, %v666, 0
        %v766 = vsel %vm291, %v667, 0
        %v769 = vsel %vm291, %v668, 0
        %v772 = vsel %vm291, %v669, 0
        %v775 = vsel %vm291, %v670, 0
        %v778 = vsel %vm291, %v671, 0
        %v781 = vsel %vm291, %v672, 0
        %v784 = vsel %vm291, %v673, 0
        %v787 = vsel %vm291, %v674, 0
        %v790 = vsel %vm291, %v675, 0
        %v793 = vsel %vm291, %v676, 0
        %v796 = vsel %vm291, %v677, 0
        %v799 = vsel %vm291, %v678, 0
        %v802 = vsel %vm291, %v679, 0
        %v805 = vsel %vm291, %v680, 0
        %v808 = vsel %vm291, %v681, 0
        %v811 = vsel %vm291, %v682, 0
        %v814 = vsel %vm291, %v683, 0
        %v817 = vsel %vm291, %v684, 0
        %v820 = vsel %vm291, %v685, 0
        %v823 = vsel %vm291, %v686, 0
        %v826 = vsel %vm291, %v687, 0
        %v829 = vsel %vm291, %v688, 0
        %v832 = vsel %vm291, %v689, 0
        %v835 = vsel %vm291, %v690, 0
        %v838 = vsel %vm291, %v691, 0
        %v841 = vsel %vm291, %v692, 0
        %v844 = vsel %vm291, %v693, 0
        %v847 = vsel %vm291, %v694, 0
        %849 = vmatpush.msra.mxu0 0.0
        %850 = vmatpush.msra.mxu0 0.0
        %851 = vmatpush.msra.mxu0 0.0
        %852 = vmatpush.msra.mxu0 0.0
        %853 = vmatpush.msra.mxu0 0.0
        %854 = vmatpush.msra.mxu0 0.0
        %855 = vmatpush.msra.mxu0 0.0
        %856 = vmatpush.msra.mxu0 0.0
        %857 = vmatpush.msra.mxu0 0.0
        %858 = vmatpush.msra.mxu0 0.0
        %859 = vmatpush.msra.mxu0 0.0
        %860 = vmatpush.msra.mxu0 0.0
        %861 = vmatpush.msra.mxu0 %v699
        %862 = vmatpush.msra.mxu0 %v698
        %863 = vmatpush.msra.mxu0 %v697
        %864 = vmatpush.msra.mxu0 %v696
        %865 = vmatmul.f32.gmra.mxu0 %v706
        %v866 = vpop.f32.mrf.mxu0
        %v867 = vadd.f32 %v703, %v866
        %868 = vmatmul.f32.gmra.mxu0 %v709
        %v869 = vpop.f32.mrf.mxu0
        %v870 = vadd.f32 %v703, %v869
        %871 = vmatmul.f32.gmra.mxu0 %v712
        %v872 = vpop.f32.mrf.mxu0
        %v873 = vadd.f32 %v703, %v872
        %874 = vmatmul.f32.gmra.mxu0 %v715
        %v875 = vpop.f32.mrf.mxu0
        %v876 = vadd.f32 %v703, %v875
        %877 = vmatmul.f32.gmra.mxu0 %v718
        %v878 = vpop.f32.mrf.mxu0
        %v879 = vadd.f32 %v703, %v878
        %880 = vmatmul.f32.gmra.mxu0 %v721
        %v881 = vpop.f32.mrf.mxu0
        %v882 = vadd.f32 %v703, %v881
        %883 = vmatmul.f32.gmra.mxu0 %v724
        %v884 = vpop.f32.mrf.mxu0
        %v885 = vadd.f32 %v703, %v884
        %886 = vmatmul.f32.gmra.mxu0 %v727
        %v887 = vpop.f32.mrf.mxu0
        %v888 = vadd.f32 %v703, %v887
        %889 = vmatmul.f32.gmra.mxu0 %v730
        %v890 = vpop.f32.mrf.mxu0
        %v891 = vadd.f32 %v703, %v890
        %892 = vmatmul.f32.gmra.mxu0 %v733
        %v893 = vpop.f32.mrf.mxu0
        %v894 = vadd.f32 %v703, %v893
        %895 = vmatmul.f32.gmra.mxu0 %v736
        %v896 = vpop.f32.mrf.mxu0
        %v897 = vadd.f32 %v703, %v896
        %898 = vmatmul.f32.gmra.mxu0 %v739
        %v899 = vpop.f32.mrf.mxu0
        %v900 = vadd.f32 %v703, %v899
        %901 = vmatmul.f32.gmra.mxu0 %v742
        %v902 = vpop.f32.mrf.mxu0
        %v903 = vadd.f32 %v703, %v902
        %904 = vmatmul.f32.gmra.mxu0 %v745
        %v905 = vpop.f32.mrf.mxu0
        %v906 = vadd.f32 %v703, %v905
        %907 = vmatmul.f32.gmra.mxu0 %v748
        %v908 = vpop.f32.mrf.mxu0
        %v909 = vadd.f32 %v703, %v908
        %910 = vmatmul.f32.gmra.mxu0 %v751
        %v911 = vpop.f32.mrf.mxu0
        %v912 = vadd.f32 %v703, %v911
        %913 = vmatmul.f32.gmra.mxu0 %v754
        %v914 = vpop.f32.mrf.mxu0
        %v915 = vadd.f32 %v703, %v914
        %916 = vmatmul.f32.gmra.mxu0 %v757
        %v917 = vpop.f32.mrf.mxu0
        %v918 = vadd.f32 %v703, %v917
        %919 = vmatmul.f32.gmra.mxu0 %v760
        %v920 = vpop.f32.mrf.mxu0
        %v921 = vadd.f32 %v703, %v920
        %922 = vmatmul.f32.gmra.mxu0 %v763
        %v923 = vpop.f32.mrf.mxu0
        %v924 = vadd.f32 %v703, %v923
        %925 = vmatmul.f32.gmra.mxu0 %v766
        %v926 = vpop.f32.mrf.mxu0
        %v927 = vadd.f32 %v703, %v926
        %928 = vmatmul.f32.gmra.mxu0 %v769
        %v929 = vpop.f32.mrf.mxu0
        %v930 = vadd.f32 %v703, %v929
        %931 = vmatmul.f32.gmra.mxu0 %v772
        %v932 = vpop.f32.mrf.mxu0
        %v933 = vadd.f32 %v703, %v932
        %934 = vmatmul.f32.gmra.mxu0 %v775
        %v935 = vpop.f32.mrf.mxu0
        %v936 = vadd.f32 %v703, %v935
        %937 = vmatmul.f32.gmra.mxu0 %v778
        %v938 = vpop.f32.mrf.mxu0
        %v939 = vadd.f32 %v703, %v938
        %940 = vmatmul.f32.gmra.mxu0 %v781
        %v941 = vpop.f32.mrf.mxu0
        %v942 = vadd.f32 %v703, %v941
        %943 = vmatmul.f32.gmra.mxu0 %v784
        %v944 = vpop.f32.mrf.mxu0
        %v945 = vadd.f32 %v703, %v944
        %946 = vmatmul.f32.gmra.mxu0 %v787
        %v947 = vpop.f32.mrf.mxu0
        %v948 = vadd.f32 %v703, %v947
        %949 = vmatmul.f32.gmra.mxu0 %v790
        %v950 = vpop.f32.mrf.mxu0
        %v951 = vadd.f32 %v703, %v950
        %952 = vmatmul.f32.gmra.mxu0 %v793
        %v953 = vpop.f32.mrf.mxu0
        %v954 = vadd.f32 %v703, %v953
        %955 = vmatmul.f32.gmra.mxu0 %v796
        %v956 = vpop.f32.mrf.mxu0
        %v957 = vadd.f32 %v703, %v956
        %958 = vmatmul.f32.gmra.mxu0 %v799
        %v959 = vpop.f32.mrf.mxu0
        %v960 = vadd.f32 %v703, %v959
        %961 = vmatmul.f32.gmra.mxu0 %v802
        %v962 = vpop.f32.mrf.mxu0
        %v963 = vadd.f32 %v703, %v962
        %964 = vmatmul.f32.gmra.mxu0 %v805
        %v965 = vpop.f32.mrf.mxu0
        %v966 = vadd.f32 %v703, %v965
        %967 = vmatmul.f32.gmra.mxu0 %v808
        %v968 = vpop.f32.mrf.mxu0
        %v969 = vadd.f32 %v703, %v968
        %970 = vmatmul.f32.gmra.mxu0 %v811
        %v971 = vpop.f32.mrf.mxu0
        %v972 = vadd.f32 %v703, %v971
        %973 = vmatmul.f32.gmra.mxu0 %v814
        %v974 = vpop.f32.mrf.mxu0
        %v975 = vadd.f32 %v703, %v974
        %976 = vmatmul.f32.gmra.mxu0 %v817
        %v977 = vpop.f32.mrf.mxu0
        %v978 = vadd.f32 %v703, %v977
        %979 = vmatmul.f32.gmra.mxu0 %v820
        %v980 = vpop.f32.mrf.mxu0
        %v981 = vadd.f32 %v703, %v980
        %982 = vmatmul.f32.gmra.mxu0 %v823
        %v983 = vpop.f32.mrf.mxu0
        %v984 = vadd.f32 %v703, %v983
        %985 = vmatmul.f32.gmra.mxu0 %v826
        %v986 = vpop.f32.mrf.mxu0
        %v987 = vadd.f32 %v703, %v986
        %988 = vmatmul.f32.gmra.mxu0 %v829
        %v989 = vpop.f32.mrf.mxu0
        %v990 = vadd.f32 %v703, %v989
        %991 = vmatmul.f32.gmra.mxu0 %v832
        %v992 = vpop.f32.mrf.mxu0
        %v993 = vadd.f32 %v703, %v992
        %994 = vmatmul.f32.gmra.mxu0 %v835
        %v995 = vpop.f32.mrf.mxu0
        %v996 = vadd.f32 %v703, %v995
        %997 = vmatmul.f32.gmra.mxu0 %v838
        %v998 = vpop.f32.mrf.mxu0
        %v999 = vadd.f32 %v703, %v998
        %1000 = vmatmul.f32.gmra.mxu0 %v841
        %v1001 = vpop.f32.mrf.mxu0
        %v1002 = vadd.f32 %v703, %v1001
        %1003 = vmatmul.f32.gmra.mxu0 %v844
        %v1004 = vpop.f32.mrf.mxu0
        %v1005 = vadd.f32 %v703, %v1004
        %1006 = vmatmul.f32.gmra.mxu0 %v847
        %v1007 = vpop.f32.mrf.mxu0
        %v1008 = vadd.f32 %v703, %v1007
        %1009 = vdwg.mxu0
        %v1010 = vmax.f32 %v867, 0.0
        %v1011 = vmax.f32 %v870, 0.0
        %v1012 = vmax.f32 %v873, 0.0
        %v1013 = vmax.f32 %v876, 0.0
        %v1014 = vmax.f32 %v879, 0.0
        %v1015 = vmax.f32 %v882, 0.0
        %v1016 = vmax.f32 %v885, 0.0
        %v1017 = vmax.f32 %v888, 0.0
        %v1018 = vmax.f32 %v891, 0.0
        %v1019 = vmax.f32 %v894, 0.0
        %v1020 = vmax.f32 %v897, 0.0
        %v1021 = vmax.f32 %v900, 0.0
        %v1022 = vmax.f32 %v903, 0.0
        %v1023 = vmax.f32 %v906, 0.0
        %v1024 = vmax.f32 %v909, 0.0
        %v1025 = vmax.f32 %v912, 0.0
        %v1026 = vmax.f32 %v915, 0.0
        %v1027 = vmax.f32 %v918, 0.0
        %v1028 = vmax.f32 %v921, 0.0
        %v1029 = vmax.f32 %v924, 0.0
        %v1030 = vmax.f32 %v927, 0.0
        %v1031 = vmax.f32 %v930, 0.0
        %v1032 = vmax.f32 %v933, 0.0
        %v1033 = vmax.f32 %v936, 0.0
        %v1034 = vmax.f32 %v939, 0.0
        %v1035 = vmax.f32 %v942, 0.0
        %v1036 = vmax.f32 %v945, 0.0
        %v1037 = vmax.f32 %v948, 0.0
        %v1038 = vmax.f32 %v951, 0.0
        %v1039 = vmax.f32 %v954, 0.0
        %v1040 = vmax.f32 %v957, 0.0
        %v1041 = vmax.f32 %v960, 0.0
        %v1042 = vmax.f32 %v963, 0.0
        %v1043 = vmax.f32 %v966, 0.0
        %v1044 = vmax.f32 %v969, 0.0
        %v1045 = vmax.f32 %v972, 0.0
        %v1046 = vmax.f32 %v975, 0.0
        %v1047 = vmax.f32 %v978, 0.0
        %v1048 = vmax.f32 %v981, 0.0
        %v1049 = vmax.f32 %v984, 0.0
        %v1050 = vmax.f32 %v987, 0.0
        %v1051 = vmax.f32 %v990, 0.0
        %v1052 = vmax.f32 %v993, 0.0
        %v1053 = vmax.f32 %v996, 0.0
        %v1054 = vmax.f32 %v999, 0.0
        %v1055 = vmax.f32 %v1002, 0.0
        %v1056 = vmax.f32 %v1005, 0.0
        %v1057 = vmax.f32 %v1008, 0.0
        %s1058 = sld [smem:[#allocation3 + $0x1]]
        %v1059 = vstv %s1058
        %v1060 = vmul.f32 %v1010, %v1059
        %v1061 = vmul.f32 %v1011, %v1059
        %v1062 = vmul.f32 %v1012, %v1059
        %v1063 = vmul.f32 %v1013, %v1059
        %v1064 = vmul.f32 %v1014, %v1059
        %v1065 = vmul.f32 %v1015, %v1059
        %v1066 = vmul.f32 %v1016, %v1059
        %v1067 = vmul.f32 %v1017, %v1059
        %v1068 = vmul.f32 %v1018, %v1059
        %v1069 = vmul.f32 %v1019, %v1059
        %v1070 = vmul.f32 %v1020, %v1059
        %v1071 = vmul.f32 %v1021, %v1059
        %v1072 = vmul.f32 %v1022, %v1059
        %v1073 = vmul.f32 %v1023, %v1059
        %v1074 = vmul.f32 %v1024, %v1059
        %v1075 = vmul.f32 %v1025, %v1059
        %v1076 = vmul.f32 %v1026, %v1059
        %v1077 = vmul.f32 %v1027, %v1059
        %v1078 = vmul.f32 %v1028, %v1059
        %v1079 = vmul.f32 %v1029, %v1059
        %v1080 = vmul.f32 %v1030, %v1059
        %v1081 = vmul.f32 %v1031, %v1059
        %v1082 = vmul.f32 %v1032, %v1059
        %v1083 = vmul.f32 %v1033, %v1059
        %v1084 = vmul.f32 %v1034, %v1059
        %v1085 = vmul.f32 %v1035, %v1059
        %v1086 = vmul.f32 %v1036, %v1059
        %v1087 = vmul.f32 %v1037, %v1059
        %v1088 = vmul.f32 %v1038, %v1059
        %v1089 = vmul.f32 %v1039, %v1059
        %v1090 = vmul.f32 %v1040, %v1059
        %v1091 = vmul.f32 %v1041, %v1059
        %v1092 = vmul.f32 %v1042, %v1059
        %v1093 = vmul.f32 %v1043, %v1059
        %v1094 = vmul.f32 %v1044, %v1059
        %v1095 = vmul.f32 %v1045, %v1059
        %v1096 = vmul.f32 %v1046, %v1059
        %v1097 = vmul.f32 %v1047, %v1059
        %v1098 = vmul.f32 %v1048, %v1059
        %v1099 = vmul.f32 %v1049, %v1059
        %v1100 = vmul.f32 %v1050, %v1059
        %v1101 = vmul.f32 %v1051, %v1059
        %v1102 = vmul.f32 %v1052, %v1059
        %v1103 = vmul.f32 %v1053, %v1059
        %v1104 = vmul.f32 %v1054, %v1059
        %v1105 = vmul.f32 %v1055, %v1059
        %v1106 = vmul.f32 %v1056, %v1059
        %v1107 = vmul.f32 %v1057, %v1059
        %s1108 = scalar_lea.vmem %s2, 64
        %v1109 = vld [vmem:[%s1108] sm:$0xff]
        %v1110 = vld [vmem:[%s1108 + $0x8] sm:$0xff]
        %v1111 = vld [vmem:[%s1108 + $0x10] sm:$0xff]
        %v1112 = vld [vmem:[%s1108 + $0x18] sm:$0xff]
        %s1113 = scalar_lea.vmem %s3, 2
        %v1114 = vld [vmem:[%s1113] sm:$0x1]
        %v1116 = vperm.slane %v1114, 0
        %v1119 = vsel %vm291, %v1060, 0
        %v1122 = vsel %vm291, %v1061, 0
        %v1125 = vsel %vm291, %v1062, 0
        %v1128 = vsel %vm291, %v1063, 0
        %v1131 = vsel %vm291, %v1064, 0
        %v1134 = vsel %vm291, %v1065, 0
        %v1137 = vsel %vm291, %v1066, 0
        %v1140 = vsel %vm291, %v1067, 0
        %v1143 = vsel %vm291, %v1068, 0
        %v1146 = vsel %vm291, %v1069, 0
        %v1149 = vsel %vm291, %v1070, 0
        %v1152 = vsel %vm291, %v1071, 0
        %v1155 = vsel %vm291, %v1072, 0
        %v1158 = vsel %vm291, %v1073, 0
        %v1161 = vsel %vm291, %v1074, 0
        %v1164 = vsel %vm291, %v1075, 0
        %v1167 = vsel %vm291, %v1076, 0
        %v1170 = vsel %vm291, %v1077, 0
        %v1173 = vsel %vm291, %v1078, 0
        %v1176 = vsel %vm291, %v1079, 0
        %v1179 = vsel %vm291, %v1080, 0
        %v1182 = vsel %vm291, %v1081, 0
        %v1185 = vsel %vm291, %v1082, 0
        %v1188 = vsel %vm291, %v1083, 0
        %v1191 = vsel %vm291, %v1084, 0
        %v1194 = vsel %vm291, %v1085, 0
        %v1197 = vsel %vm291, %v1086, 0
        %v1200 = vsel %vm291, %v1087, 0
        %v1203 = vsel %vm291, %v1088, 0
        %v1206 = vsel %vm291, %v1089, 0
        %v1209 = vsel %vm291, %v1090, 0
        %v1212 = vsel %vm291, %v1091, 0
        %v1215 = vsel %vm291, %v1092, 0
        %v1218 = vsel %vm291, %v1093, 0
        %v1221 = vsel %vm291, %v1094, 0
        %v1224 = vsel %vm291, %v1095, 0
        %v1227 = vsel %vm291, %v1096, 0
        %v1230 = vsel %vm291, %v1097, 0
        %v1233 = vsel %vm291, %v1098, 0
        %v1236 = vsel %vm291, %v1099, 0
        %v1239 = vsel %vm291, %v1100, 0
        %v1242 = vsel %vm291, %v1101, 0
        %v1245 = vsel %vm291, %v1102, 0
        %v1248 = vsel %vm291, %v1103, 0
        %v1251 = vsel %vm291, %v1104, 0
        %v1254 = vsel %vm291, %v1105, 0
        %v1257 = vsel %vm291, %v1106, 0
        %v1260 = vsel %vm291, %v1107, 0
        %1262 = vmatpush.msra.mxu0 0.0
        %1263 = vmatpush.msra.mxu0 0.0
        %1264 = vmatpush.msra.mxu0 0.0
        %1265 = vmatpush.msra.mxu0 0.0
        %1266 = vmatpush.msra.mxu0 0.0
        %1267 = vmatpush.msra.mxu0 0.0
        %1268 = vmatpush.msra.mxu0 0.0
        %1269 = vmatpush.msra.mxu0 0.0
        %1270 = vmatpush.msra.mxu0 0.0
        %1271 = vmatpush.msra.mxu0 0.0
        %1272 = vmatpush.msra.mxu0 0.0
        %1273 = vmatpush.msra.mxu0 0.0
        %1274 = vmatpush.msra.mxu0 %v1112
        %1275 = vmatpush.msra.mxu0 %v1111
        %1276 = vmatpush.msra.mxu0 %v1110
        %1277 = vmatpush.msra.mxu0 %v1109
        %1278 = vmatmul.f32.gmra.mxu0 %v1119
        %v1279 = vpop.f32.mrf.mxu0
        %v1280 = vadd.f32 %v1116, %v1279
        %1281 = vmatmul.f32.gmra.mxu0 %v1122
        %v1282 = vpop.f32.mrf.mxu0
        %v1283 = vadd.f32 %v1116, %v1282
        %1284 = vmatmul.f32.gmra.mxu0 %v1125
        %v1285 = vpop.f32.mrf.mxu0
        %v1286 = vadd.f32 %v1116, %v1285
        %1287 = vmatmul.f32.gmra.mxu0 %v1128
        %v1288 = vpop.f32.mrf.mxu0
        %v1289 = vadd.f32 %v1116, %v1288
        %1290 = vmatmul.f32.gmra.mxu0 %v1131
        %v1291 = vpop.f32.mrf.mxu0
        %v1292 = vadd.f32 %v1116, %v1291
        %1293 = vmatmul.f32.gmra.mxu0 %v1134
        %v1294 = vpop.f32.mrf.mxu0
        %v1295 = vadd.f32 %v1116, %v1294
        %1296 = vmatmul.f32.gmra.mxu0 %v1137
        %v1297 = vpop.f32.mrf.mxu0
        %v1298 = vadd.f32 %v1116, %v1297
        %1299 = vmatmul.f32.gmra.mxu0 %v1140
        %v1300 = vpop.f32.mrf.mxu0
        %v1301 = vadd.f32 %v1116, %v1300
        %1302 = vmatmul.f32.gmra.mxu0 %v1143
        %v1303 = vpop.f32.mrf.mxu0
        %v1304 = vadd.f32 %v1116, %v1303
        %1305 = vmatmul.f32.gmra.mxu0 %v1146
        %v1306 = vpop.f32.mrf.mxu0
        %v1307 = vadd.f32 %v1116, %v1306
        %1308 = vmatmul.f32.gmra.mxu0 %v1149
        %v1309 = vpop.f32.mrf.mxu0
        %v1310 = vadd.f32 %v1116, %v1309
        %1311 = vmatmul.f32.gmra.mxu0 %v1152
        %v1312 = vpop.f32.mrf.mxu0
        %v1313 = vadd.f32 %v1116, %v1312
        %1314 = vmatmul.f32.gmra.mxu0 %v1155
        %v1315 = vpop.f32.mrf.mxu0
        %v1316 = vadd.f32 %v1116, %v1315
        %1317 = vmatmul.f32.gmra.mxu0 %v1158
        %v1318 = vpop.f32.mrf.mxu0
        %v1319 = vadd.f32 %v1116, %v1318
        %1320 = vmatmul.f32.gmra.mxu0 %v1161
        %v1321 = vpop.f32.mrf.mxu0
        %v1322 = vadd.f32 %v1116, %v1321
        %1323 = vmatmul.f32.gmra.mxu0 %v1164
        %v1324 = vpop.f32.mrf.mxu0
        %v1325 = vadd.f32 %v1116, %v1324
        %1326 = vmatmul.f32.gmra.mxu0 %v1167
        %v1327 = vpop.f32.mrf.mxu0
        %v1328 = vadd.f32 %v1116, %v1327
        %1329 = vmatmul.f32.gmra.mxu0 %v1170
        %v1330 = vpop.f32.mrf.mxu0
        %v1331 = vadd.f32 %v1116, %v1330
        %1332 = vmatmul.f32.gmra.mxu0 %v1173
        %v1333 = vpop.f32.mrf.mxu0
        %v1334 = vadd.f32 %v1116, %v1333
        %1335 = vmatmul.f32.gmra.mxu0 %v1176
        %v1336 = vpop.f32.mrf.mxu0
        %v1337 = vadd.f32 %v1116, %v1336
        %1338 = vmatmul.f32.gmra.mxu0 %v1179
        %v1339 = vpop.f32.mrf.mxu0
        %v1340 = vadd.f32 %v1116, %v1339
        %1341 = vmatmul.f32.gmra.mxu0 %v1182
        %v1342 = vpop.f32.mrf.mxu0
        %v1343 = vadd.f32 %v1116, %v1342
        %1344 = vmatmul.f32.gmra.mxu0 %v1185
        %v1345 = vpop.f32.mrf.mxu0
        %v1346 = vadd.f32 %v1116, %v1345
        %1347 = vmatmul.f32.gmra.mxu0 %v1188
        %v1348 = vpop.f32.mrf.mxu0
        %v1349 = vadd.f32 %v1116, %v1348
        %1350 = vmatmul.f32.gmra.mxu0 %v1191
        %v1351 = vpop.f32.mrf.mxu0
        %v1352 = vadd.f32 %v1116, %v1351
        %1353 = vmatmul.f32.gmra.mxu0 %v1194
        %v1354 = vpop.f32.mrf.mxu0
        %v1355 = vadd.f32 %v1116, %v1354
        %1356 = vmatmul.f32.gmra.mxu0 %v1197
        %v1357 = vpop.f32.mrf.mxu0
        %v1358 = vadd.f32 %v1116, %v1357
        %1359 = vmatmul.f32.gmra.mxu0 %v1200
        %v1360 = vpop.f32.mrf.mxu0
        %v1361 = vadd.f32 %v1116, %v1360
        %1362 = vmatmul.f32.gmra.mxu0 %v1203
        %v1363 = vpop.f32.mrf.mxu0
        %v1364 = vadd.f32 %v1116, %v1363
        %1365 = vmatmul.f32.gmra.mxu0 %v1206
        %v1366 = vpop.f32.mrf.mxu0
        %v1367 = vadd.f32 %v1116, %v1366
        %1368 = vmatmul.f32.gmra.mxu0 %v1209
        %v1369 = vpop.f32.mrf.mxu0
        %v1370 = vadd.f32 %v1116, %v1369
        %1371 = vmatmul.f32.gmra.mxu0 %v1212
        %v1372 = vpop.f32.mrf.mxu0
        %v1373 = vadd.f32 %v1116, %v1372
        %1374 = vmatmul.f32.gmra.mxu0 %v1215
        %v1375 = vpop.f32.mrf.mxu0
        %v1376 = vadd.f32 %v1116, %v1375
        %1377 = vmatmul.f32.gmra.mxu0 %v1218
        %v1378 = vpop.f32.mrf.mxu0
        %v1379 = vadd.f32 %v1116, %v1378
        %1380 = vmatmul.f32.gmra.mxu0 %v1221
        %v1381 = vpop.f32.mrf.mxu0
        %v1382 = vadd.f32 %v1116, %v1381
        %1383 = vmatmul.f32.gmra.mxu0 %v1224
        %v1384 = vpop.f32.mrf.mxu0
        %v1385 = vadd.f32 %v1116, %v1384
        %1386 = vmatmul.f32.gmra.mxu0 %v1227
        %v1387 = vpop.f32.mrf.mxu0
        %v1388 = vadd.f32 %v1116, %v1387
        %1389 = vmatmul.f32.gmra.mxu0 %v1230
        %v1390 = vpop.f32.mrf.mxu0
        %v1391 = vadd.f32 %v1116, %v1390
        %1392 = vmatmul.f32.gmra.mxu0 %v1233
        %v1393 = vpop.f32.mrf.mxu0
        %v1394 = vadd.f32 %v1116, %v1393
        %1395 = vmatmul.f32.gmra.mxu0 %v1236
        %v1396 = vpop.f32.mrf.mxu0
        %v1397 = vadd.f32 %v1116, %v1396
        %1398 = vmatmul.f32.gmra.mxu0 %v1239
        %v1399 = vpop.f32.mrf.mxu0
        %v1400 = vadd.f32 %v1116, %v1399
        %1401 = vmatmul.f32.gmra.mxu0 %v1242
        %v1402 = vpop.f32.mrf.mxu0
        %v1403 = vadd.f32 %v1116, %v1402
        %1404 = vmatmul.f32.gmra.mxu0 %v1245
        %v1405 = vpop.f32.mrf.mxu0
        %v1406 = vadd.f32 %v1116, %v1405
        %1407 = vmatmul.f32.gmra.mxu0 %v1248
        %v1408 = vpop.f32.mrf.mxu0
        %v1409 = vadd.f32 %v1116, %v1408
        %1410 = vmatmul.f32.gmra.mxu0 %v1251
        %v1411 = vpop.f32.mrf.mxu0
        %v1412 = vadd.f32 %v1116, %v1411
        %1413 = vmatmul.f32.gmra.mxu0 %v1254
        %v1414 = vpop.f32.mrf.mxu0
        %v1415 = vadd.f32 %v1116, %v1414
        %1416 = vmatmul.f32.gmra.mxu0 %v1257
        %v1417 = vpop.f32.mrf.mxu0
        %v1418 = vadd.f32 %v1116, %v1417
        %1419 = vmatmul.f32.gmra.mxu0 %v1260
        %v1420 = vpop.f32.mrf.mxu0
        %v1421 = vadd.f32 %v1116, %v1420
        %1422 = vdwg.mxu0
        %v1423 = vmax.f32 %v1280, 0.0
        %v1424 = vmax.f32 %v1283, 0.0
        %v1425 = vmax.f32 %v1286, 0.0
        %v1426 = vmax.f32 %v1289, 0.0
        %v1427 = vmax.f32 %v1292, 0.0
        %v1428 = vmax.f32 %v1295, 0.0
        %v1429 = vmax.f32 %v1298, 0.0
        %v1430 = vmax.f32 %v1301, 0.0
        %v1431 = vmax.f32 %v1304, 0.0
        %v1432 = vmax.f32 %v1307, 0.0
        %v1433 = vmax.f32 %v1310, 0.0
        %v1434 = vmax.f32 %v1313, 0.0
        %v1435 = vmax.f32 %v1316, 0.0
        %v1436 = vmax.f32 %v1319, 0.0
        %v1437 = vmax.f32 %v1322, 0.0
        %v1438 = vmax.f32 %v1325, 0.0
        %v1439 = vmax.f32 %v1328, 0.0
        %v1440 = vmax.f32 %v1331, 0.0
        %v1441 = vmax.f32 %v1334, 0.0
        %v1442 = vmax.f32 %v1337, 0.0
        %v1443 = vmax.f32 %v1340, 0.0
        %v1444 = vmax.f32 %v1343, 0.0
        %v1445 = vmax.f32 %v1346, 0.0
        %v1446 = vmax.f32 %v1349, 0.0
        %v1447 = vmax.f32 %v1352, 0.0
        %v1448 = vmax.f32 %v1355, 0.0
        %v1449 = vmax.f32 %v1358, 0.0
        %v1450 = vmax.f32 %v1361, 0.0
        %v1451 = vmax.f32 %v1364, 0.0
        %v1452 = vmax.f32 %v1367, 0.0
        %v1453 = vmax.f32 %v1370, 0.0
        %v1454 = vmax.f32 %v1373, 0.0
        %v1455 = vmax.f32 %v1376, 0.0
        %v1456 = vmax.f32 %v1379, 0.0
        %v1457 = vmax.f32 %v1382, 0.0
        %v1458 = vmax.f32 %v1385, 0.0
        %v1459 = vmax.f32 %v1388, 0.0
        %v1460 = vmax.f32 %v1391, 0.0
        %v1461 = vmax.f32 %v1394, 0.0
        %v1462 = vmax.f32 %v1397, 0.0
        %v1463 = vmax.f32 %v1400, 0.0
        %v1464 = vmax.f32 %v1403, 0.0
        %v1465 = vmax.f32 %v1406, 0.0
        %v1466 = vmax.f32 %v1409, 0.0
        %v1467 = vmax.f32 %v1412, 0.0
        %v1468 = vmax.f32 %v1415, 0.0
        %v1469 = vmax.f32 %v1418, 0.0
        %v1470 = vmax.f32 %v1421, 0.0
        %s1471 = scalar_lea.vmem %s2, 96
        %v1472 = vld [vmem:[%s1471] sm:$0xff]
        %v1473 = vld [vmem:[%s1471 + $0x8] sm:$0xff]
        %v1474 = vld [vmem:[%s1471 + $0x10] sm:$0xff]
        %v1475 = vld [vmem:[%s1471 + $0x18] sm:$0xff]
        %s1476 = scalar_lea.vmem %s3, 3
        %v1477 = vld [vmem:[%s1476] sm:$0x1]
        %v1479 = vperm.slane %v1477, 0
        %v1482 = vsel %vm291, %v1423, 0
        %v1485 = vsel %vm291, %v1424, 0
        %v1488 = vsel %vm291, %v1425, 0
        %v1491 = vsel %vm291, %v1426, 0
        %v1494 = vsel %vm291, %v1427, 0
        %v1497 = vsel %vm291, %v1428, 0
        %v1500 = vsel %vm291, %v1429, 0
        %v1503 = vsel %vm291, %v1430, 0
        %v1506 = vsel %vm291, %v1431, 0
        %v1509 = vsel %vm291, %v1432, 0
        %v1512 = vsel %vm291, %v1433, 0
        %v1515 = vsel %vm291, %v1434, 0
        %v1518 = vsel %vm291, %v1435, 0
        %v1521 = vsel %vm291, %v1436, 0
        %v1524 = vsel %vm291, %v1437, 0
        %v1527 = vsel %vm291, %v1438, 0
        %v1530 = vsel %vm291, %v1439, 0
        %v1533 = vsel %vm291, %v1440, 0
        %v1536 = vsel %vm291, %v1441, 0
        %v1539 = vsel %vm291, %v1442, 0
        %v1542 = vsel %vm291, %v1443, 0
        %v1545 = vsel %vm291, %v1444, 0
        %v1548 = vsel %vm291, %v1445, 0
        %v1551 = vsel %vm291, %v1446, 0
        %v1554 = vsel %vm291, %v1447, 0
        %v1557 = vsel %vm291, %v1448, 0
        %v1560 = vsel %vm291, %v1449, 0
        %v1563 = vsel %vm291, %v1450, 0
        %v1566 = vsel %vm291, %v1451, 0
        %v1569 = vsel %vm291, %v1452, 0
        %v1572 = vsel %vm291, %v1453, 0
        %v1575 = vsel %vm291, %v1454, 0
        %v1578 = vsel %vm291, %v1455, 0
        %v1581 = vsel %vm291, %v1456, 0
        %v1584 = vsel %vm291, %v1457, 0
        %v1587 = vsel %vm291, %v1458, 0
        %v1590 = vsel %vm291, %v1459, 0
        %v1593 = vsel %vm291, %v1460, 0
        %v1596 = vsel %vm291, %v1461, 0
        %v1599 = vsel %vm291, %v1462, 0
        %v1602 = vsel %vm291, %v1463, 0
        %v1605 = vsel %vm291, %v1464, 0
        %v1608 = vsel %vm291, %v1465, 0
        %v1611 = vsel %vm291, %v1466, 0
        %v1614 = vsel %vm291, %v1467, 0
        %v1617 = vsel %vm291, %v1468, 0
        %v1620 = vsel %vm291, %v1469, 0
        %v1623 = vsel %vm291, %v1470, 0
        %1625 = vmatpush.msra.mxu0 0.0
        %1626 = vmatpush.msra.mxu0 0.0
        %1627 = vmatpush.msra.mxu0 0.0
        %1628 = vmatpush.msra.mxu0 0.0
        %1629 = vmatpush.msra.mxu0 0.0
        %1630 = vmatpush.msra.mxu0 0.0
        %1631 = vmatpush.msra.mxu0 0.0
        %1632 = vmatpush.msra.mxu0 0.0
        %1633 = vmatpush.msra.mxu0 0.0
        %1634 = vmatpush.msra.mxu0 0.0
        %1635 = vmatpush.msra.mxu0 0.0
        %1636 = vmatpush.msra.mxu0 0.0
        %1637 = vmatpush.msra.mxu0 %v1475
        %1638 = vmatpush.msra.mxu0 %v1474
        %1639 = vmatpush.msra.mxu0 %v1473
        %1640 = vmatpush.msra.mxu0 %v1472
        %1641 = vmatmul.f32.gmra.mxu0 %v1482
        %v1642 = vpop.f32.mrf.mxu0
        %v1643 = vadd.f32 %v1479, %v1642
        %1644 = vmatmul.f32.gmra.mxu0 %v1485
        %v1645 = vpop.f32.mrf.mxu0
        %v1646 = vadd.f32 %v1479, %v1645
        %1647 = vmatmul.f32.gmra.mxu0 %v1488
        %v1648 = vpop.f32.mrf.mxu0
        %v1649 = vadd.f32 %v1479, %v1648
        %1650 = vmatmul.f32.gmra.mxu0 %v1491
        %v1651 = vpop.f32.mrf.mxu0
        %v1652 = vadd.f32 %v1479, %v1651
        %1653 = vmatmul.f32.gmra.mxu0 %v1494
        %v1654 = vpop.f32.mrf.mxu0
        %v1655 = vadd.f32 %v1479, %v1654
        %1656 = vmatmul.f32.gmra.mxu0 %v1497
        %v1657 = vpop.f32.mrf.mxu0
        %v1658 = vadd.f32 %v1479, %v1657
        %1659 = vmatmul.f32.gmra.mxu0 %v1500
        %v1660 = vpop.f32.mrf.mxu0
        %v1661 = vadd.f32 %v1479, %v1660
        %1662 = vmatmul.f32.gmra.mxu0 %v1503
        %v1663 = vpop.f32.mrf.mxu0
        %v1664 = vadd.f32 %v1479, %v1663
        %1665 = vmatmul.f32.gmra.mxu0 %v1506
        %v1666 = vpop.f32.mrf.mxu0
        %v1667 = vadd.f32 %v1479, %v1666
        %1668 = vmatmul.f32.gmra.mxu0 %v1509
        %v1669 = vpop.f32.mrf.mxu0
        %v1670 = vadd.f32 %v1479, %v1669
        %1671 = vmatmul.f32.gmra.mxu0 %v1512
        %v1672 = vpop.f32.mrf.mxu0
        %v1673 = vadd.f32 %v1479, %v1672
        %1674 = vmatmul.f32.gmra.mxu0 %v1515
        %v1675 = vpop.f32.mrf.mxu0
        %v1676 = vadd.f32 %v1479, %v1675
        %1677 = vmatmul.f32.gmra.mxu0 %v1518
        %v1678 = vpop.f32.mrf.mxu0
        %v1679 = vadd.f32 %v1479, %v1678
        %1680 = vmatmul.f32.gmra.mxu0 %v1521
        %v1681 = vpop.f32.mrf.mxu0
        %v1682 = vadd.f32 %v1479, %v1681
        %1683 = vmatmul.f32.gmra.mxu0 %v1524
        %v1684 = vpop.f32.mrf.mxu0
        %v1685 = vadd.f32 %v1479, %v1684
        %1686 = vmatmul.f32.gmra.mxu0 %v1527
        %v1687 = vpop.f32.mrf.mxu0
        %v1688 = vadd.f32 %v1479, %v1687
        %1689 = vmatmul.f32.gmra.mxu0 %v1530
        %v1690 = vpop.f32.mrf.mxu0
        %v1691 = vadd.f32 %v1479, %v1690
        %1692 = vmatmul.f32.gmra.mxu0 %v1533
        %v1693 = vpop.f32.mrf.mxu0
        %v1694 = vadd.f32 %v1479, %v1693
        %1695 = vmatmul.f32.gmra.mxu0 %v1536
        %v1696 = vpop.f32.mrf.mxu0
        %v1697 = vadd.f32 %v1479, %v1696
        %1698 = vmatmul.f32.gmra.mxu0 %v1539
        %v1699 = vpop.f32.mrf.mxu0
        %v1700 = vadd.f32 %v1479, %v1699
        %1701 = vmatmul.f32.gmra.mxu0 %v1542
        %v1702 = vpop.f32.mrf.mxu0
        %v1703 = vadd.f32 %v1479, %v1702
        %1704 = vmatmul.f32.gmra.mxu0 %v1545
        %v1705 = vpop.f32.mrf.mxu0
        %v1706 = vadd.f32 %v1479, %v1705
        %1707 = vmatmul.f32.gmra.mxu0 %v1548
        %v1708 = vpop.f32.mrf.mxu0
        %v1709 = vadd.f32 %v1479, %v1708
        %1710 = vmatmul.f32.gmra.mxu0 %v1551
        %v1711 = vpop.f32.mrf.mxu0
        %v1712 = vadd.f32 %v1479, %v1711
        %1713 = vmatmul.f32.gmra.mxu0 %v1554
        %v1714 = vpop.f32.mrf.mxu0
        %v1715 = vadd.f32 %v1479, %v1714
        %1716 = vmatmul.f32.gmra.mxu0 %v1557
        %v1717 = vpop.f32.mrf.mxu0
        %v1718 = vadd.f32 %v1479, %v1717
        %1719 = vmatmul.f32.gmra.mxu0 %v1560
        %v1720 = vpop.f32.mrf.mxu0
        %v1721 = vadd.f32 %v1479, %v1720
        %1722 = vmatmul.f32.gmra.mxu0 %v1563
        %v1723 = vpop.f32.mrf.mxu0
        %v1724 = vadd.f32 %v1479, %v1723
        %1725 = vmatmul.f32.gmra.mxu0 %v1566
        %v1726 = vpop.f32.mrf.mxu0
        %v1727 = vadd.f32 %v1479, %v1726
        %1728 = vmatmul.f32.gmra.mxu0 %v1569
        %v1729 = vpop.f32.mrf.mxu0
        %v1730 = vadd.f32 %v1479, %v1729
        %1731 = vmatmul.f32.gmra.mxu0 %v1572
        %v1732 = vpop.f32.mrf.mxu0
        %v1733 = vadd.f32 %v1479, %v1732
        %1734 = vmatmul.f32.gmra.mxu0 %v1575
        %v1735 = vpop.f32.mrf.mxu0
        %v1736 = vadd.f32 %v1479, %v1735
        %1737 = vmatmul.f32.gmra.mxu0 %v1578
        %v1738 = vpop.f32.mrf.mxu0
        %v1739 = vadd.f32 %v1479, %v1738
        %1740 = vmatmul.f32.gmra.mxu0 %v1581
        %v1741 = vpop.f32.mrf.mxu0
        %v1742 = vadd.f32 %v1479, %v1741
        %1743 = vmatmul.f32.gmra.mxu0 %v1584
        %v1744 = vpop.f32.mrf.mxu0
        %v1745 = vadd.f32 %v1479, %v1744
        %1746 = vmatmul.f32.gmra.mxu0 %v1587
        %v1747 = vpop.f32.mrf.mxu0
        %v1748 = vadd.f32 %v1479, %v1747
        %1749 = vmatmul.f32.gmra.mxu0 %v1590
        %v1750 = vpop.f32.mrf.mxu0
        %v1751 = vadd.f32 %v1479, %v1750
        %1752 = vmatmul.f32.gmra.mxu0 %v1593
        %v1753 = vpop.f32.mrf.mxu0
        %v1754 = vadd.f32 %v1479, %v1753
        %1755 = vmatmul.f32.gmra.mxu0 %v1596
        %v1756 = vpop.f32.mrf.mxu0
        %v1757 = vadd.f32 %v1479, %v1756
        %1758 = vmatmul.f32.gmra.mxu0 %v1599
        %v1759 = vpop.f32.mrf.mxu0
        %v1760 = vadd.f32 %v1479, %v1759
        %1761 = vmatmul.f32.gmra.mxu0 %v1602
        %v1762 = vpop.f32.mrf.mxu0
        %v1763 = vadd.f32 %v1479, %v1762
        %1764 = vmatmul.f32.gmra.mxu0 %v1605
        %v1765 = vpop.f32.mrf.mxu0
        %v1766 = vadd.f32 %v1479, %v1765
        %1767 = vmatmul.f32.gmra.mxu0 %v1608
        %v1768 = vpop.f32.mrf.mxu0
        %v1769 = vadd.f32 %v1479, %v1768
        %1770 = vmatmul.f32.gmra.mxu0 %v1611
        %v1771 = vpop.f32.mrf.mxu0
        %v1772 = vadd.f32 %v1479, %v1771
        %1773 = vmatmul.f32.gmra.mxu0 %v1614
        %v1774 = vpop.f32.mrf.mxu0
        %v1775 = vadd.f32 %v1479, %v1774
        %1776 = vmatmul.f32.gmra.mxu0 %v1617
        %v1777 = vpop.f32.mrf.mxu0
        %v1778 = vadd.f32 %v1479, %v1777
        %1779 = vmatmul.f32.gmra.mxu0 %v1620
        %v1780 = vpop.f32.mrf.mxu0
        %v1781 = vadd.f32 %v1479, %v1780
        %1782 = vmatmul.f32.gmra.mxu0 %v1623
        %v1783 = vpop.f32.mrf.mxu0
        %v1784 = vadd.f32 %v1479, %v1783
        %1785 = vdwg.mxu0
        %v1786 = vmax.f32 %v1643, 0.0
        %v1787 = vmax.f32 %v1646, 0.0
        %v1788 = vmax.f32 %v1649, 0.0
        %v1789 = vmax.f32 %v1652, 0.0
        %v1790 = vmax.f32 %v1655, 0.0
        %v1791 = vmax.f32 %v1658, 0.0
        %v1792 = vmax.f32 %v1661, 0.0
        %v1793 = vmax.f32 %v1664, 0.0
        %v1794 = vmax.f32 %v1667, 0.0
        %v1795 = vmax.f32 %v1670, 0.0
        %v1796 = vmax.f32 %v1673, 0.0
        %v1797 = vmax.f32 %v1676, 0.0
        %v1798 = vmax.f32 %v1679, 0.0
        %v1799 = vmax.f32 %v1682, 0.0
        %v1800 = vmax.f32 %v1685, 0.0
        %v1801 = vmax.f32 %v1688, 0.0
        %v1802 = vmax.f32 %v1691, 0.0
        %v1803 = vmax.f32 %v1694, 0.0
        %v1804 = vmax.f32 %v1697, 0.0
        %v1805 = vmax.f32 %v1700, 0.0
        %v1806 = vmax.f32 %v1703, 0.0
        %v1807 = vmax.f32 %v1706, 0.0
        %v1808 = vmax.f32 %v1709, 0.0
        %v1809 = vmax.f32 %v1712, 0.0
        %v1810 = vmax.f32 %v1715, 0.0
        %v1811 = vmax.f32 %v1718, 0.0
        %v1812 = vmax.f32 %v1721, 0.0
        %v1813 = vmax.f32 %v1724, 0.0
        %v1814 = vmax.f32 %v1727, 0.0
        %v1815 = vmax.f32 %v1730, 0.0
        %v1816 = vmax.f32 %v1733, 0.0
        %v1817 = vmax.f32 %v1736, 0.0
        %v1818 = vmax.f32 %v1739, 0.0
        %v1819 = vmax.f32 %v1742, 0.0
        %v1820 = vmax.f32 %v1745, 0.0
        %v1821 = vmax.f32 %v1748, 0.0
        %v1822 = vmax.f32 %v1751, 0.0
        %v1823 = vmax.f32 %v1754, 0.0
        %v1824 = vmax.f32 %v1757, 0.0
        %v1825 = vmax.f32 %v1760, 0.0
        %v1826 = vmax.f32 %v1763, 0.0
        %v1827 = vmax.f32 %v1766, 0.0
        %v1828 = vmax.f32 %v1769, 0.0
        %v1829 = vmax.f32 %v1772, 0.0
        %v1830 = vmax.f32 %v1775, 0.0
        %v1831 = vmax.f32 %v1778, 0.0
        %v1832 = vmax.f32 %v1781, 0.0
        %v1833 = vmax.f32 %v1784, 0.0
        %v1834 = vld [vmem:[%s4] sm:$0x3]
        %v1835 = vld [vmem:[%s5] sm:$0x3]
        %1837 = vset.pattern.permute.xlu0 0
        %1838 = vperm.xlu0 %1837, %v1835
        %v1839 = vpop.permute.xlu0 %1838
        %v1842 = vsel %vm291, %v1834, 0
        %v1845 = vsel %vm291, %v1786, 0
        %v1848 = vsel %vm291, %v1787, 0
        %v1851 = vsel %vm291, %v1788, 0
        %v1854 = vsel %vm291, %v1789, 0
        %v1857 = vsel %vm291, %v1790, 0
        %v1860 = vsel %vm291, %v1791, 0
        %v1863 = vsel %vm291, %v1792, 0
        %v1866 = vsel %vm291, %v1793, 0
        %v1869 = vsel %vm291, %v1794, 0
        %v1872 = vsel %vm291, %v1795, 0
        %v1875 = vsel %vm291, %v1796, 0
        %v1878 = vsel %vm291, %v1797, 0
        %v1881 = vsel %vm291, %v1798, 0
        %v1884 = vsel %vm291, %v1799, 0
        %v1887 = vsel %vm291, %v1800, 0
        %v1890 = vsel %vm291, %v1801, 0
        %v1893 = vsel %vm291, %v1802, 0
        %v1896 = vsel %vm291, %v1803, 0
        %v1899 = vsel %vm291, %v1804, 0
        %v1902 = vsel %vm291, %v1805, 0
        %v1905 = vsel %vm291, %v1806, 0
        %v1908 = vsel %vm291, %v1807, 0
        %v1911 = vsel %vm291, %v1808, 0
        %v1914 = vsel %vm291, %v1809, 0
        %v1917 = vsel %vm291, %v1810, 0
        %v1920 = vsel %vm291, %v1811, 0
        %v1923 = vsel %vm291, %v1812, 0
        %v1926 = vsel %vm291, %v1813, 0
        %v1929 = vsel %vm291, %v1814, 0
        %v1932 = vsel %vm291, %v1815, 0
        %v1935 = vsel %vm291, %v1816, 0
        %v1938 = vsel %vm291, %v1817, 0
        %v1941 = vsel %vm291, %v1818, 0
        %v1944 = vsel %vm291, %v1819, 0
        %v1947 = vsel %vm291, %v1820, 0
        %v1950 = vsel %vm291, %v1821, 0
        %v1953 = vsel %vm291, %v1822, 0
        %v1956 = vsel %vm291, %v1823, 0
        %v1959 = vsel %vm291, %v1824, 0
        %v1962 = vsel %vm291, %v1825, 0
        %v1965 = vsel %vm291, %v1826, 0
        %v1968 = vsel %vm291, %v1827, 0
        %v1971 = vsel %vm291, %v1828, 0
        %v1974 = vsel %vm291, %v1829, 0
        %v1977 = vsel %vm291, %v1830, 0
        %v1980 = vsel %vm291, %v1831, 0
        %v1983 = vsel %vm291, %v1832, 0
        %v1986 = vsel %vm291, %v1833, 0
        %1988 = vmatpush.xpose.msra.mxu0 %v1890
        %1989 = vmatpush.xpose.msra.mxu0 %v1887
        %1990 = vmatpush.xpose.msra.mxu0 %v1884
        %1991 = vmatpush.xpose.msra.mxu0 %v1881
        %1992 = vmatpush.xpose.msra.mxu0 %v1878
        %1993 = vmatpush.xpose.msra.mxu0 %v1875
        %1994 = vmatpush.xpose.msra.mxu0 %v1872
        %1995 = vmatpush.xpose.msra.mxu0 %v1869
        %1996 = vmatpush.xpose.msra.mxu0 %v1866
        %1997 = vmatpush.xpose.msra.mxu0 %v1863
        %1998 = vmatpush.xpose.msra.mxu0 %v1860
        %1999 = vmatpush.xpose.msra.mxu0 %v1857
        %2000 = vmatpush.xpose.msra.mxu0 %v1854
        %2001 = vmatpush.xpose.msra.mxu0 %v1851
        %2002 = vmatpush.xpose.msra.mxu0 %v1848
        %2003 = vmatpush.xpose.msra.mxu0 %v1845
        %2004 = vmatmul.f32.gmra.mxu0 %v1842
        %v2005 = vpop.f32.mrf.mxu0
        %v2006 = vadd.f32 %v1839, %v2005
        %2007 = vdwg.mxu0
        %2008 = vmatpush.xpose.msra.mxu0 %v1938
        %2009 = vmatpush.xpose.msra.mxu0 %v1935
        %2010 = vmatpush.xpose.msra.mxu0 %v1932
        %2011 = vmatpush.xpose.msra.mxu0 %v1929
        %2012 = vmatpush.xpose.msra.mxu0 %v1926
        %2013 = vmatpush.xpose.msra.mxu0 %v1923
        %2014 = vmatpush.xpose.msra.mxu0 %v1920
        %2015 = vmatpush.xpose.msra.mxu0 %v1917
        %2016 = vmatpush.xpose.msra.mxu0 %v1914
        %2017 = vmatpush.xpose.msra.mxu0 %v1911
        %2018 = vmatpush.xpose.msra.mxu0 %v1908
        %2019 = vmatpush.xpose.msra.mxu0 %v1905
        %2020 = vmatpush.xpose.msra.mxu0 %v1902
        %2021 = vmatpush.xpose.msra.mxu0 %v1899
        %2022 = vmatpush.xpose.msra.mxu0 %v1896
        %2023 = vmatpush.xpose.msra.mxu0 %v1893
        %2024 = vmatmul.f32.gmra.mxu0 %v1842
        %v2025 = vpop.f32.mrf.mxu0
        %v2026 = vadd.f32 %v1839, %v2025
        %2027 = vdwg.mxu0
        %2028 = vmatpush.xpose.msra.mxu0 %v1986
        %2029 = vmatpush.xpose.msra.mxu0 %v1983
        %2030 = vmatpush.xpose.msra.mxu0 %v1980
        %2031 = vmatpush.xpose.msra.mxu0 %v1977
        %2032 = vmatpush.xpose.msra.mxu0 %v1974
        %2033 = vmatpush.xpose.msra.mxu0 %v1971
        %2034 = vmatpush.xpose.msra.mxu0 %v1968
        %2035 = vmatpush.xpose.msra.mxu0 %v1965
        %2036 = vmatpush.xpose.msra.mxu0 %v1962
        %2037 = vmatpush.xpose.msra.mxu0 %v1959
        %2038 = vmatpush.xpose.msra.mxu0 %v1956
        %2039 = vmatpush.xpose.msra.mxu0 %v1953
        %2040 = vmatpush.xpose.msra.mxu0 %v1950
        %2041 = vmatpush.xpose.msra.mxu0 %v1947
        %2042 = vmatpush.xpose.msra.mxu0 %v1944
        %2043 = vmatpush.xpose.msra.mxu0 %v1941
        %2044 = vmatmul.f32.gmra.mxu0 %v1842
        %v2045 = vpop.f32.mrf.mxu0
        %v2046 = vadd.f32 %v1839, %v2045
        %2047 = vdwg.mxu0
        %v2051 = vrot.slane %v2026, 6
        %v2052 = vrot.slane %v2046, 4
        %vm2053 = vcmask 1041408
        %v2054 = vsel %vm2053, %v2006, %v2051
        %vm2055 = vcmask 1043456
        %v2056 = vsel %vm2055, %v2054, %v2052
        %2058 = vst [vmem:[%s227] sm:$0x3f] %v2056
        %s2059 = sand.u32 %s146, 1
        %s2060 = scalar_lea.sflag [#allocation5], %s2059
        %s2061 = sand.u32 %s146, 1
        %s2062 = smul.addr %s2061, 6
        %s2063 = scalar_lea.vmem [#allocation4], %s2062
        // Predicated region
        $region41: #{tpu_custom_call.1} parent=39 // pred_check
          %p2064 = pneg %p156
        $region42: #{tpu_custom_call.1} parent=39 // pred_check_branch
          %2066 = sbr.rel (%p2064) target = $region44
        $region43: #{tpu_custom_call.1} parent=39 // pred_region
          %s2067 = smul.u32 3, %s28
          %2069 = vsyncadd %s2060, 0
          %s2070 = smul.addr %s2067, 2
          %s2071 = scalar_lea.hbm %s6, %s2070
          %s2073 = sshll.u32 %s2063, 4
          %s2074 = int_to_ptr.vmem [resolvable:$true] %s2073
          %s2075 = sshll.u32 %s2071, 4
          %s2076 = int_to_ptr.hbm [resolvable:$true] %s2075
          %2078 = dma.vmem_to_hbm [thread:$0]  %s2074, 96, %s2076, %s2060
        $region44: #{tpu_custom_call.1} parent=39 // pred_fallthru
          _
      $region40: #{tpu_custom_call.1} parent=5 // pred_fallthru
        _
      %p2079 = scmp.le.s32.totalorder 2, %s23
      // Predicated region
      $region45: #{tpu_custom_call.1} parent=5 // pred_check
        %p2080 = pneg %p2079
      $region46: #{tpu_custom_call.1} parent=5 // pred_check_branch
        %2082 = sbr.rel (%p2080) target = $region48
      $region47: #{tpu_custom_call.1} parent=5 // pred_region
        %s2083 = ssub.s32 %s23, 2
        // Predicated region
        $region49: #{tpu_custom_call.1} parent=47 // pred_check
          %p2084 = pneg %p162
        $region50: #{tpu_custom_call.1} parent=47 // pred_check_branch
          %2086 = sbr.rel (%p2084) target = $region52
        $region51: #{tpu_custom_call.1} parent=47 // pred_region
          %s2087 = sand.u32 %s147, 1
          %s2088 = scalar_lea.sflag [#allocation5], %s2087
          %s2089 = sand.u32 %s147, 1
          %s2090 = smul.addr %s2089, 6
          %s2091 = scalar_lea.vmem [#allocation4], %s2090
          %2093 = dma.done %s2088, 96
        $region52: #{tpu_custom_call.1} parent=47 // pred_fallthru
          _
      $region48: #{tpu_custom_call.1} parent=5 // pred_fallthru
        _
    $region6: #{tpu_custom_call.1} parent=1 // loop_footer
      %s27 = sadd.s32 1, %s23
    $region7: #{tpu_custom_call.1} parent=1 // loop_footer_branch
      %22 = sbr.rel target = $region3
    $region8: #{tpu_custom_call.1} parent=1 // loop_exit
      _
    %2094 = vsyncpa [#allocation5], 1
    %s2095 = scalar_lea.sflag [#allocation5], 1
    %2096 = vsyncpa %s2095, 1

</llo_original>
